<compile_context>
chip_gen: v5e
topology: v5e:2x2
jax: 0.10.0
libtpu: 0.0.40
codegen_flags: <defaults>
</compile_context>

<pallas_src>
import functools

import jax
import jax.numpy as jnp
import numpy as np
from jax.experimental import pallas as pl
from jax.experimental.pallas import tpu as pltpu


def _relative_position_index(window_size):
    """Static numpy copy of the PyTorch relative_position_index buffer."""
    Wh, Ww = window_size
    coords = np.stack(np.meshgrid(np.arange(Wh), np.arange(Ww), indexing="ij"))
    coords_flatten = coords.reshape(2, -1)                          # (2, N)
    rel = coords_flatten[:, :, None] - coords_flatten[:, None, :]   # (2, N, N)
    rel = rel.transpose(1, 2, 0).astype(np.int64)
    rel[:, :, 0] += Wh - 1
    rel[:, :, 1] += Ww - 1
    rel[:, :, 0] *= 2 * Ww - 1
    return rel.sum(-1).astype(np.int32)                             # (N, N)


def _pick_groups_per_step(num_groups, WB, N, C):
    """How many mask-groups (of WB windows) each grid step processes.

    Targets a large, MXU-friendly M = G*WB*N while (a) keeping the per-step
    f32 working set well under the default scoped-VMEM limit (also fits
    v7x's 64 MiB VMEM) and (b) keeping >= 2 grid steps when possible so both
    v7x TensorCores get work under dimension_semantics=("parallel",).
    """
    max_rows = 2048                     # cap on M per grid step
    vmem_budget = 12 * 1024 * 1024      # conservative f32 working-set budget

    def fits(g):
        M = g * WB * N
        work = 4 * (4 * M * C           # x, v blocks double-buffered (<=4B/elt)
                    + M * C             # output block
                    + 3 * M * C         # q_all, k_all, o_scratch (f32)
                    + 2 * g * WB * N * N)   # attn + one temp (f32)
        return M <= max_rows and work <= vmem_budget

    divisors = [g for g in range(1, num_groups + 1) if num_groups % g == 0]
    best = 1
    for g in divisors:
        if fits(g):
            best = g
    if num_groups >= 2:
        while num_groups // best < 2:   # keep at least 2 grid steps
            best = max(g for g in divisors if g < best)
    return best


# ----------------------------------------------------------------------------
# Fused kernel: one grid step = G mask-groups = W = G*WB windows
# ----------------------------------------------------------------------------
def _window_attn_kernel(x_ref, v_ref, wq_ref, bq_ref, wk_ref, bk_ref,
                        bm_ref, wp_ref, bp_ref, o_ref, o_acc, *, num_heads):
    W, N, C = x_ref.shape
    nH = num_heads
    hd = C // nH
    M = W * N
    WBm = bm_ref.shape[1]               # nW when masked, 1 otherwise
    G = W // WBm

    x2d = x_ref[...].reshape(M, C)      # leading-dim collapse only
    v3d = v_ref[...]                    # (W, N, C)

    # Full-C Q/K projections: (M, C) @ (C, C) -> full MXU contraction depth.
    # Softmax scale is already folded into wq / bq at trace time.
    q_all = jnp.dot(x2d, wq_ref[...],
                    preferred_element_type=jnp.float32) + bq_ref[...]
    k_all = jnp.dot(x2d, wk_ref[...],
                    preferred_element_type=jnp.float32) + bk_ref[...]

    bm = bm_ref[...]                    # (nH, WBm, N, N) f32, bias (+ mask)

    for h in range(nH):                 # static unroll; nH is small
        sl = slice(h * hd, (h + 1) * hd)        # static lane slice per head
        qh = q_all[:, sl].reshape(W, N, hd)
        kh = k_all[:, sl].reshape(W, N, hd)

        attn = jnp.einsum("wnd,wmd->wnm", qh, kh,
                          preferred_element_type=jnp.float32)
        # Pre-summed relative-position-bias + window mask, tiled over the G
        # mask-groups in this block (pure leading-dim reshape).
        attn = (attn.reshape(G, WBm, N, N) + bm[h]).reshape(W, N, N)

        # Numerically stable softmax over the key axis; one reciprocal per
        # row (then a multiply) instead of an elementwise divide.
        attn = attn - jnp.max(attn, axis=-1, keepdims=True)
        attn = jnp.exp(attn)
        attn = attn * (1.0 / jnp.sum(attn, axis=-1, keepdims=True))

        vh = v3d[:, :, sl]                              # (W, N, hd)
        oh = jnp.einsum("wnm,wmd->wnd", attn.astype(vh.dtype), vh,
                        preferred_element_type=jnp.float32)
        # Head-concat via lane-slice store into the (M, C) scratch; the
        # output projection then runs as ONE full-C matmul after the loop.
        o_acc[:, sl] = oh.reshape(M, hd)

    out = jnp.dot(o_acc[...], wp_ref[...],
                  preferred_element_type=jnp.float32) + bp_ref[...]
    # attn_drop / proj_drop default to p=0.0 -> identity in eval mode.
    o_ref[...] = out.reshape(W, N, C).astype(o_ref.dtype)


# ----------------------------------------------------------------------------
# Wrapper
# ----------------------------------------------------------------------------
@functools.partial(jax.jit, static_argnames=("window_size", "num_heads"))
def window_attention_forward(x, v, params, window_size, num_heads, mask=None):
    """x, v: (B_, N, C) with N == Wh*Ww and C == dim == v_dim."""
    B_, N, C = x.shape
    assert C == v.shape[-1], "self.dim != v.shape[-1]"
    assert C % num_heads == 0, "dim must be divisible by num_heads"
    hd = C // num_heads
    scale = float(hd) ** -0.5                       # qk_scale=None default
    f32 = jnp.float32

    # Trace-time weight prep: full-C Wq / Wk (scale folded into Wq, bq).
    wqk, bqk = params["wqk"], params["bqk"]         # (C, 2C), (2C,)
    wq = wqk[:, :C] * scale                         # (C, C), scaled
    wk = wqk[:, C:]                                 # (C, C)
    bq = (bqk[:C] * scale).reshape(1, C).astype(f32)
    bk = bqk[C:].reshape(1, C).astype(f32)
    wp = params["wproj"]                            # (C, C)
    bp = params["bproj"].reshape(1, C).astype(f32)

    # Relative-position bias (tiny gather) pre-summed with the window mask.
    rel_index = jnp.asarray(_relative_position_index(window_size))  # (N, N)
    bias = jnp.take(params["rpb_table"], rel_index.reshape(-1), axis=0)
    bias = bias.reshape(N, N, num_heads).transpose(2, 0, 1).astype(f32)
    if mask is not None:
        WB = int(mask.shape[0])                     # nW windows per group
        bm = bias[:, None, :, :] + mask.astype(f32)[None, :, :, :]  # (nH,nW,N,N)
    else:
        WB = 1
        bm = bias[:, None, :, :]                    # (nH, 1, N, N)

    assert B_ % WB == 0, "B_ must be a multiple of the number of mask windows"
    num_groups = B_ // WB
    G = _pick_groups_per_step(num_groups, WB, N, C)
    W = G * WB                                      # windows per grid step
    grid = (num_groups // G,)

    itemsize = int(jnp.dtype(x.dtype).itemsize)
    flops = int(2 * B_ * N * C * (2 * C)            # Q + K projections
                + 4 * B_ * num_heads * N * N * hd   # scores + attn@v
                + 2 * B_ * N * C * C)               # output projection
    bytes_accessed = int(itemsize * 3 * B_ * N * C
                         + 4 * (wq.size + wk.size + wp.size + bq.size
                                + bk.size + bp.size + bm.size))
    cost = pl.CostEstimate(flops=flops,
                           transcendentals=int(B_ * num_heads * N * N),
                           bytes_accessed=bytes_accessed)

    kernel = functools.partial(_window_attn_kernel, num_heads=num_heads)
    out = pl.pallas_call(
        kernel,
        out_shape=jax.ShapeDtypeStruct((B_, N, C), x.dtype),
        grid=grid,
        in_specs=[
            pl.BlockSpec((W, N, C), lambda b: (b, 0, 0)),            # x
            pl.BlockSpec((W, N, C), lambda b: (b, 0, 0)),            # v
            pl.BlockSpec((C, C), lambda b: (0, 0)),                  # wq (scaled)
            pl.BlockSpec((1, C), lambda b: (0, 0)),                  # bq (scaled)
            pl.BlockSpec((C, C), lambda b: (0, 0)),                  # wk
            pl.BlockSpec((1, C), lambda b: (0, 0)),                  # bk
            pl.BlockSpec(tuple(bm.shape), lambda b: (0, 0, 0, 0)),   # bias+mask
            pl.BlockSpec((C, C), lambda b: (0, 0)),                  # wp
            pl.BlockSpec((1, C), lambda b: (0, 0)),                  # bp
        ],
        out_specs=pl.BlockSpec((W, N, C), lambda b: (b, 0, 0)),
        scratch_shapes=[pltpu.VMEM((W * N, C), jnp.float32)],        # head-concat
        compiler_params=pltpu.CompilerParams(
            dimension_semantics=("parallel",)),
        cost_estimate=cost,
    )(x, v, wq, bq, wk, bk, bm, wp, bp)
    return out


# ----------------------------------------------------------------------------
# Pure-JAX reference (mirrors the PyTorch forward exactly) for verification
# ----------------------------------------------------------------------------
def _ref_forward(x, v, params, window_size, num_heads, mask=None):
    B_, N, C = x.shape
    hd = C // num_heads
    scale = float(hd) ** -0.5

    qk = x @ params["wqk"] + params["bqk"]                 # (B_, N, 2C)
    qk = qk.reshape(B_, N, 2, num_heads, hd)
    qk = jnp.transpose(qk, (2, 0, 3, 1, 4))                # (2, B_, nH, N, hd)
    q, k = qk[0] * scale, qk[1]
    attn = jnp.einsum("bhnd,bhmd->bhnm", q, k)

    rel_index = jnp.asarray(_relative_position_index(window_size))
    bias = params["rpb_table"][rel_index.reshape(-1)]
    bias = bias.reshape(N, N, num_heads).transpose(2, 0, 1)
    attn = attn + bias[None]

    if mask is not None:
        nW = mask.shape[0]
        attn = attn.reshape(B_ // nW, nW, num_heads, N, N) + mask[None, :, None]
        attn = attn.reshape(B_, num_heads, N, N)
    attn = jax.nn.softmax(attn, axis=-1)

    vh = jnp.transpose(v.reshape(B_, N, num_heads, hd), (0, 2, 1, 3))
    out = jnp.einsum("bhnm,bhmd->bhnd", attn, vh)
    out = jnp.transpose(out, (0, 2, 1, 3)).reshape(B_, N, C)
    return out @ params["wproj"] + params["bproj"]


# ----------------------------------------------------------------------------
if __name__ == "__main__":
    key = jax.random.PRNGKey(0)
    ks = jax.random.split(key, 8)

    B, Wh, Ww, C, nH = 2, 4, 4, 32, 4
    nW = 4                     # number of windows per image (mask groups)
    N = Wh * Ww                # tokens per window
    B_ = B * nW                # num_windows * batch

    x = jax.random.normal(ks[0], (B_, N, C), jnp.float32)
    v = jax.random.normal(ks[1], (B_, N, C), jnp.float32)
    params = {
        "wqk": 0.1 * jax.random.normal(ks[2], (C, 2 * C), jnp.float32),
        "bqk": 0.1 * jax.random.normal(ks[3], (2 * C,), jnp.float32),
        "wproj": 0.1 * jax.random.normal(ks[4], (C, C), jnp.float32),
        "bproj": 0.1 * jax.random.normal(ks[5], (C,), jnp.float32),
        "rpb_table": 0.02 * jax.random.normal(
            ks[6], ((2 * Wh - 1) * (2 * Ww - 1), nH), jnp.float32),
    }
    # Shifted-window style 0 / -100 mask; keep the diagonal unmasked.
    mprob = jax.random.uniform(ks[7], (nW, N, N))
    mask = jnp.where(mprob < 0.5, 0.0, -100.0)
    mask = jnp.where(jnp.eye(N, dtype=bool)[None], 0.0, mask).astype(jnp.float32)

    # Masked path
    out_m = jax.block_until_ready(
        window_attention_forward(x, v, params, (Wh, Ww), nH, mask))
    ref_m = _ref_forward(x, v, params, (Wh, Ww), nH, mask)
    np.testing.assert_allclose(np.asarray(out_m), np.asarray(ref_m),
                               rtol=1e-4, atol=1e-4)

    # Unmasked path
    out_n = jax.block_until_ready(
        window_attention_forward(x, v, params, (Wh, Ww), nH, None))
    ref_n = _ref_forward(x, v, params, (Wh, Ww), nH, None)
    np.testing.assert_allclose(np.asarray(out_n), np.asarray(ref_n),
                               rtol=1e-4, atol=1e-4)

    assert out_m.shape == (B_, N, C)
    print("KERNEL_OK")
</pallas_src>

<mosaic_0001>
module attributes {stable_mosaic.version = 11 : i64} {
  func.func @_window_attn_kernel(%arg0: i32, %arg1: memref<4x16x32xf32, #tpu.memory_space<vmem>>, %arg2: memref<4x16x32xf32, #tpu.memory_space<vmem>>, %arg3: memref<32x32xf32, #tpu.memory_space<vmem>>, %arg4: memref<1x32xf32, #tpu.memory_space<vmem>>, %arg5: memref<32x32xf32, #tpu.memory_space<vmem>>, %arg6: memref<1x32xf32, #tpu.memory_space<vmem>>, %arg7: memref<4x4x16x16xf32, #tpu.memory_space<vmem>>, %arg8: memref<32x32xf32, #tpu.memory_space<vmem>>, %arg9: memref<1x32xf32, #tpu.memory_space<vmem>>, %arg10: memref<4x16x32xf32, #tpu.memory_space<vmem>>, %arg11: memref<64x32xf32, #tpu.memory_space<vmem>>) attributes {dimension_semantics = [#tpu.dimension_semantics<parallel>], iteration_bounds = array<i64: 2>, scalar_prefetch = 0 : i64, scratch_operands = 1 : i64, tpu.core_type = #tpu.core_type<tc>, window_params = [{transform_indices = @transform_0, window_bounds = array<i64: 4, 16, 32>}, {transform_indices = @transform_1, window_bounds = array<i64: 4, 16, 32>}, {pipeline_mode = #tpu.pipeline_mode<synchronous>, transform_indices = @transform_2, window_bounds = array<i64: 32, 32>}, {pipeline_mode = #tpu.pipeline_mode<synchronous>, transform_indices = @transform_3, window_bounds = array<i64: 1, 32>}, {pipeline_mode = #tpu.pipeline_mode<synchronous>, transform_indices = @transform_4, window_bounds = array<i64: 32, 32>}, {pipeline_mode = #tpu.pipeline_mode<synchronous>, transform_indices = @transform_5, window_bounds = array<i64: 1, 32>}, {pipeline_mode = #tpu.pipeline_mode<synchronous>, transform_indices = @transform_6, window_bounds = array<i64: 4, 4, 16, 16>}, {pipeline_mode = #tpu.pipeline_mode<synchronous>, transform_indices = @transform_7, window_bounds = array<i64: 32, 32>}, {pipeline_mode = #tpu.pipeline_mode<synchronous>, transform_indices = @transform_8, window_bounds = array<i64: 1, 32>}, {transform_indices = @transform_9, window_bounds = array<i64: 4, 16, 32>}]} {
    %c0 = arith.constant 0 : index
    %c0_0 = arith.constant 0 : index
    %c0_1 = arith.constant 0 : index
    %0 = vector.load %arg1[%c0, %c0_0, %c0_1] : memref<4x16x32xf32, #tpu.memory_space<vmem>>, vector<4x16x32xf32>
    %1 = vector.shape_cast %0 : vector<4x16x32xf32> to vector<64x32xf32>
    %c0_2 = arith.constant 0 : index
    %c0_3 = arith.constant 0 : index
    %c0_4 = arith.constant 0 : index
    %2 = vector.load %arg2[%c0_2, %c0_3, %c0_4] : memref<4x16x32xf32, #tpu.memory_space<vmem>>, vector<4x16x32xf32>
    %c0_5 = arith.constant 0 : index
    %c0_6 = arith.constant 0 : index
    %3 = vector.load %arg3[%c0_5, %c0_6] : memref<32x32xf32, #tpu.memory_space<vmem>>, vector<32x32xf32>
    %cst = arith.constant dense<0.000000e+00> : vector<64x32xf32>
    %4 = tpu.matmul %1, %3, %cst {dimension_numbers = #tpu.dot_dimension_numbers<[1], [0], [0], [1], [0, 0, 1, 1], [], []>} : vector<64x32xf32>, vector<32x32xf32>, vector<64x32xf32> -> vector<64x32xf32>
    %c0_7 = arith.constant 0 : index
    %c0_8 = arith.constant 0 : index
    %5 = vector.load %arg4[%c0_7, %c0_8] : memref<1x32xf32, #tpu.memory_space<vmem>>, vector<1x32xf32>
    %6 = vector.broadcast %5 : vector<1x32xf32> to vector<64x32xf32>
    %7 = arith.addf %4, %6 : vector<64x32xf32>
    %c0_9 = arith.constant 0 : index
    %c0_10 = arith.constant 0 : index
    %8 = vector.load %arg5[%c0_9, %c0_10] : memref<32x32xf32, #tpu.memory_space<vmem>>, vector<32x32xf32>
    %cst_11 = arith.constant dense<0.000000e+00> : vector<64x32xf32>
    %9 = tpu.matmul %1, %8, %cst_11 {dimension_numbers = #tpu.dot_dimension_numbers<[1], [0], [0], [1], [0, 0, 1, 1], [], []>} : vector<64x32xf32>, vector<32x32xf32>, vector<64x32xf32> -> vector<64x32xf32>
    %c0_12 = arith.constant 0 : index
    %c0_13 = arith.constant 0 : index
    %10 = vector.load %arg6[%c0_12, %c0_13] : memref<1x32xf32, #tpu.memory_space<vmem>>, vector<1x32xf32>
    %11 = vector.broadcast %10 : vector<1x32xf32> to vector<64x32xf32>
    %12 = arith.addf %9, %11 : vector<64x32xf32>
    %c0_14 = arith.constant 0 : index
    %c0_15 = arith.constant 0 : index
    %c0_16 = arith.constant 0 : index
    %c0_17 = arith.constant 0 : index
    %13 = vector.load %arg7[%c0_14, %c0_15, %c0_16, %c0_17] : memref<4x4x16x16xf32, #tpu.memory_space<vmem>>, vector<4x4x16x16xf32>
    %14 = vector.extract_strided_slice %7 {offsets = [0, 0], sizes = [64, 8], strides = [1, 1]} : vector<64x32xf32> to vector<64x8xf32>
    %15 = vector.shape_cast %14 : vector<64x8xf32> to vector<4x16x8xf32>
    %16 = vector.extract_strided_slice %12 {offsets = [0, 0], sizes = [64, 8], strides = [1, 1]} : vector<64x32xf32> to vector<64x8xf32>
    %17 = vector.shape_cast %16 : vector<64x8xf32> to vector<4x16x8xf32>
    "tpu.trace_start"() <{level = 10 : i32, message = "wnd,wmd->wnm"}> : () -> ()
    %cst_18 = arith.constant dense<0.000000e+00> : vector<4x16x16xf32>
    %18 = tpu.matmul %15, %17, %cst_18 {dimension_numbers = #tpu.dot_dimension_numbers<[2], [2], [1], [1], [0, 0, 0, 1, 1, 1], [0], [0]>} : vector<4x16x8xf32>, vector<4x16x8xf32>, vector<4x16x16xf32> -> vector<4x16x16xf32>
    "tpu.trace_stop"() : () -> ()
    %19 = vector.shape_cast %18 : vector<4x16x16xf32> to vector<1x4x16x16xf32>
    %20 = vector.extract_strided_slice %13 {offsets = [0, 0, 0, 0], sizes = [1, 4, 16, 16], strides = [1, 1, 1, 1]} : vector<4x4x16x16xf32> to vector<1x4x16x16xf32>
    %21 = vector.shape_cast %20 : vector<1x4x16x16xf32> to vector<4x16x16xf32>
    %22 = vector.shape_cast %21 : vector<4x16x16xf32> to vector<1x4x16x16xf32>
    %23 = arith.addf %19, %22 : vector<1x4x16x16xf32>
    %24 = vector.shape_cast %23 : vector<1x4x16x16xf32> to vector<4x16x16xf32>
    %cst_19 = arith.constant dense<0xFF800000> : vector<4x16xf32>
    %25 = vector.multi_reduction <maximumf>, %24, %cst_19 [2] : vector<4x16x16xf32> to vector<4x16xf32>
    %26 = vector.shape_cast %25 : vector<4x16xf32> to vector<4x16x1xf32>
    %27 = vector.broadcast %26 : vector<4x16x1xf32> to vector<4x16x16xf32>
    %28 = arith.subf %24, %27 : vector<4x16x16xf32>
    %29 = math.exp %28 : vector<4x16x16xf32>
    %cst_20 = arith.constant dense<0.000000e+00> : vector<4x16xf32>
    %30 = vector.multi_reduction <add>, %29, %cst_20 [2] : vector<4x16x16xf32> to vector<4x16xf32>
    %31 = vector.shape_cast %30 : vector<4x16xf32> to vector<4x16x1xf32>
    %cst_21 = arith.constant 1.000000e+00 : f32
    %32 = vector.broadcast %cst_21 : f32 to vector<4x16x1xf32>
    %33 = arith.divf %32, %31 : vector<4x16x1xf32>
    %34 = vector.broadcast %33 : vector<4x16x1xf32> to vector<4x16x16xf32>
    %35 = arith.mulf %29, %34 : vector<4x16x16xf32>
    %36 = vector.extract_strided_slice %2 {offsets = [0, 0, 0], sizes = [4, 16, 8], strides = [1, 1, 1]} : vector<4x16x32xf32> to vector<4x16x8xf32>
    "tpu.trace_start"() <{level = 10 : i32, message = "wnm,wmd->wnd"}> : () -> ()
    %cst_22 = arith.constant dense<0.000000e+00> : vector<4x16x8xf32>
    %37 = tpu.matmul %35, %36, %cst_22 {dimension_numbers = #tpu.dot_dimension_numbers<[2], [1], [1], [2], [0, 0, 0, 1, 1, 2], [0], [0]>} : vector<4x16x16xf32>, vector<4x16x8xf32>, vector<4x16x8xf32> -> vector<4x16x8xf32>
    "tpu.trace_stop"() : () -> ()
    %38 = vector.shape_cast %37 : vector<4x16x8xf32> to vector<64x8xf32>
    %c0_23 = arith.constant 0 : index
    %c0_24 = arith.constant 0 : index
    %39 = vector.load %arg11[%c0_23, %c0_24] : memref<64x32xf32, #tpu.memory_space<vmem>>, vector<64x8xf32>
    tpu.vector_store %arg11[%c0_23, %c0_24], %38 {strides = array<i32>} : memref<64x32xf32, #tpu.memory_space<vmem>>, vector<64x8xf32>,
    %40 = vector.extract_strided_slice %7 {offsets = [0, 8], sizes = [64, 8], strides = [1, 1]} : vector<64x32xf32> to vector<64x8xf32>
    %41 = vector.shape_cast %40 : vector<64x8xf32> to vector<4x16x8xf32>
    %42 = vector.extract_strided_slice %12 {offsets = [0, 8], sizes = [64, 8], strides = [1, 1]} : vector<64x32xf32> to vector<64x8xf32>
    %43 = vector.shape_cast %42 : vector<64x8xf32> to vector<4x16x8xf32>
    "tpu.trace_start"() <{level = 10 : i32, message = "wnd,wmd->wnm"}> : () -> ()
    %cst_25 = arith.constant dense<0.000000e+00> : vector<4x16x16xf32>
    %44 = tpu.matmul %41, %43, %cst_25 {dimension_numbers = #tpu.dot_dimension_numbers<[2], [2], [1], [1], [0, 0, 0, 1, 1, 1], [0], [0]>} : vector<4x16x8xf32>, vector<4x16x8xf32>, vector<4x16x16xf32> -> vector<4x16x16xf32>
    "tpu.trace_stop"() : () -> ()
    %45 = vector.shape_cast %44 : vector<4x16x16xf32> to vector<1x4x16x16xf32>
    %46 = vector.extract_strided_slice %13 {offsets = [1, 0, 0, 0], sizes = [1, 4, 16, 16], strides = [1, 1, 1, 1]} : vector<4x4x16x16xf32> to vector<1x4x16x16xf32>
    %47 = vector.shape_cast %46 : vector<1x4x16x16xf32> to vector<4x16x16xf32>
    %48 = vector.shape_cast %47 : vector<4x16x16xf32> to vector<1x4x16x16xf32>
    %49 = arith.addf %45, %48 : vector<1x4x16x16xf32>
    %50 = vector.shape_cast %49 : vector<1x4x16x16xf32> to vector<4x16x16xf32>
    %cst_26 = arith.constant dense<0xFF800000> : vector<4x16xf32>
    %51 = vector.multi_reduction <maximumf>, %50, %cst_26 [2] : vector<4x16x16xf32> to vector<4x16xf32>
    %52 = vector.shape_cast %51 : vector<4x16xf32> to vector<4x16x1xf32>
    %53 = vector.broadcast %52 : vector<4x16x1xf32> to vector<4x16x16xf32>
    %54 = arith.subf %50, %53 : vector<4x16x16xf32>
    %55 = math.exp %54 : vector<4x16x16xf32>
    %cst_27 = arith.constant dense<0.000000e+00> : vector<4x16xf32>
    %56 = vector.multi_reduction <add>, %55, %cst_27 [2] : vector<4x16x16xf32> to vector<4x16xf32>
    %57 = vector.shape_cast %56 : vector<4x16xf32> to vector<4x16x1xf32>
    %cst_28 = arith.constant 1.000000e+00 : f32
    %58 = vector.broadcast %cst_28 : f32 to vector<4x16x1xf32>
    %59 = arith.divf %58, %57 : vector<4x16x1xf32>
    %60 = vector.broadcast %59 : vector<4x16x1xf32> to vector<4x16x16xf32>
    %61 = arith.mulf %55, %60 : vector<4x16x16xf32>
    %62 = vector.extract_strided_slice %2 {offsets = [0, 0, 8], sizes = [4, 16, 8], strides = [1, 1, 1]} : vector<4x16x32xf32> to vector<4x16x8xf32>
    "tpu.trace_start"() <{level = 10 : i32, message = "wnm,wmd->wnd"}> : () -> ()
    %cst_29 = arith.constant dense<0.000000e+00> : vector<4x16x8xf32>
    %63 = tpu.matmul %61, %62, %cst_29 {dimension_numbers = #tpu.dot_dimension_numbers<[2], [1], [1], [2], [0, 0, 0, 1, 1, 2], [0], [0]>} : vector<4x16x16xf32>, vector<4x16x8xf32>, vector<4x16x8xf32> -> vector<4x16x8xf32>
    "tpu.trace_stop"() : () -> ()
    %64 = vector.shape_cast %63 : vector<4x16x8xf32> to vector<64x8xf32>
    %c0_30 = arith.constant 0 : index
    %c8 = arith.constant 8 : index
    %65 = vector.load %arg11[%c0_30, %c8] : memref<64x32xf32, #tpu.memory_space<vmem>>, vector<64x8xf32>
    tpu.vector_store %arg11[%c0_30, %c8], %64 {strides = array<i32>} : memref<64x32xf32, #tpu.memory_space<vmem>>, vector<64x8xf32>,
    %66 = vector.extract_strided_slice %7 {offsets = [0, 16], sizes = [64, 8], strides = [1, 1]} : vector<64x32xf32> to vector<64x8xf32>
    %67 = vector.shape_cast %66 : vector<64x8xf32> to vector<4x16x8xf32>
    %68 = vector.extract_strided_slice %12 {offsets = [0, 16], sizes = [64, 8], strides = [1, 1]} : vector<64x32xf32> to vector<64x8xf32>
    %69 = vector.shape_cast %68 : vector<64x8xf32> to vector<4x16x8xf32>
    "tpu.trace_start"() <{level = 10 : i32, message = "wnd,wmd->wnm"}> : () -> ()
    %cst_31 = arith.constant dense<0.000000e+00> : vector<4x16x16xf32>
    %70 = tpu.matmul %67, %69, %cst_31 {dimension_numbers = #tpu.dot_dimension_numbers<[2], [2], [1], [1], [0, 0, 0, 1, 1, 1], [0], [0]>} : vector<4x16x8xf32>, vector<4x16x8xf32>, vector<4x16x16xf32> -> vector<4x16x16xf32>
    "tpu.trace_stop"() : () -> ()
    %71 = vector.shape_cast %70 : vector<4x16x16xf32> to vector<1x4x16x16xf32>
    %72 = vector.extract_strided_slice %13 {offsets = [2, 0, 0, 0], sizes = [1, 4, 16, 16], strides = [1, 1, 1, 1]} : vector<4x4x16x16xf32> to vector<1x4x16x16xf32>
    %73 = vector.shape_cast %72 : vector<1x4x16x16xf32> to vector<4x16x16xf32>
    %74 = vector.shape_cast %73 : vector<4x16x16xf32> to vector<1x4x16x16xf32>
    %75 = arith.addf %71, %74 : vector<1x4x16x16xf32>
    %76 = vector.shape_cast %75 : vector<1x4x16x16xf32> to vector<4x16x16xf32>
    %cst_32 = arith.constant dense<0xFF800000> : vector<4x16xf32>
    %77 = vector.multi_reduction <maximumf>, %76, %cst_32 [2] : vector<4x16x16xf32> to vector<4x16xf32>
    %78 = vector.shape_cast %77 : vector<4x16xf32> to vector<4x16x1xf32>
    %79 = vector.broadcast %78 : vector<4x16x1xf32> to vector<4x16x16xf32>
    %80 = arith.subf %76, %79 : vector<4x16x16xf32>
    %81 = math.exp %80 : vector<4x16x16xf32>
    %cst_33 = arith.constant dense<0.000000e+00> : vector<4x16xf32>
    %82 = vector.multi_reduction <add>, %81, %cst_33 [2] : vector<4x16x16xf32> to vector<4x16xf32>
    %83 = vector.shape_cast %82 : vector<4x16xf32> to vector<4x16x1xf32>
    %cst_34 = arith.constant 1.000000e+00 : f32
    %84 = vector.broadcast %cst_34 : f32 to vector<4x16x1xf32>
    %85 = arith.divf %84, %83 : vector<4x16x1xf32>
    %86 = vector.broadcast %85 : vector<4x16x1xf32> to vector<4x16x16xf32>
    %87 = arith.mulf %81, %86 : vector<4x16x16xf32>
    %88 = vector.extract_strided_slice %2 {offsets = [0, 0, 16], sizes = [4, 16, 8], strides = [1, 1, 1]} : vector<4x16x32xf32> to vector<4x16x8xf32>
    "tpu.trace_start"() <{level = 10 : i32, message = "wnm,wmd->wnd"}> : () -> ()
    %cst_35 = arith.constant dense<0.000000e+00> : vector<4x16x8xf32>
    %89 = tpu.matmul %87, %88, %cst_35 {dimension_numbers = #tpu.dot_dimension_numbers<[2], [1], [1], [2], [0, 0, 0, 1, 1, 2], [0], [0]>} : vector<4x16x16xf32>, vector<4x16x8xf32>, vector<4x16x8xf32> -> vector<4x16x8xf32>
    "tpu.trace_stop"() : () -> ()
    %90 = vector.shape_cast %89 : vector<4x16x8xf32> to vector<64x8xf32>
    %c0_36 = arith.constant 0 : index
    %c16 = arith.constant 16 : index
    %91 = vector.load %arg11[%c0_36, %c16] : memref<64x32xf32, #tpu.memory_space<vmem>>, vector<64x8xf32>
    tpu.vector_store %arg11[%c0_36, %c16], %90 {strides = array<i32>} : memref<64x32xf32, #tpu.memory_space<vmem>>, vector<64x8xf32>,
    %92 = vector.extract_strided_slice %7 {offsets = [0, 24], sizes = [64, 8], strides = [1, 1]} : vector<64x32xf32> to vector<64x8xf32>
    %93 = vector.shape_cast %92 : vector<64x8xf32> to vector<4x16x8xf32>
    %94 = vector.extract_strided_slice %12 {offsets = [0, 24], sizes = [64, 8], strides = [1, 1]} : vector<64x32xf32> to vector<64x8xf32>
    %95 = vector.shape_cast %94 : vector<64x8xf32> to vector<4x16x8xf32>
    "tpu.trace_start"() <{level = 10 : i32, message = "wnd,wmd->wnm"}> : () -> ()
    %cst_37 = arith.constant dense<0.000000e+00> : vector<4x16x16xf32>
    %96 = tpu.matmul %93, %95, %cst_37 {dimension_numbers = #tpu.dot_dimension_numbers<[2], [2], [1], [1], [0, 0, 0, 1, 1, 1], [0], [0]>} : vector<4x16x8xf32>, vector<4x16x8xf32>, vector<4x16x16xf32> -> vector<4x16x16xf32>
    "tpu.trace_stop"() : () -> ()
    %97 = vector.shape_cast %96 : vector<4x16x16xf32> to vector<1x4x16x16xf32>
    %98 = vector.extract_strided_slice %13 {offsets = [3, 0, 0, 0], sizes = [1, 4, 16, 16], strides = [1, 1, 1, 1]} : vector<4x4x16x16xf32> to vector<1x4x16x16xf32>
    %99 = vector.shape_cast %98 : vector<1x4x16x16xf32> to vector<4x16x16xf32>
    %100 = vector.shape_cast %99 : vector<4x16x16xf32> to vector<1x4x16x16xf32>
    %101 = arith.addf %97, %100 : vector<1x4x16x16xf32>
    %102 = vector.shape_cast %101 : vector<1x4x16x16xf32> to vector<4x16x16xf32>
    %cst_38 = arith.constant dense<0xFF800000> : vector<4x16xf32>
    %103 = vector.multi_reduction <maximumf>, %102, %cst_38 [2] : vector<4x16x16xf32> to vector<4x16xf32>
    %104 = vector.shape_cast %103 : vector<4x16xf32> to vector<4x16x1xf32>
    %105 = vector.broadcast %104 : vector<4x16x1xf32> to vector<4x16x16xf32>
    %106 = arith.subf %102, %105 : vector<4x16x16xf32>
    %107 = math.exp %106 : vector<4x16x16xf32>
    %cst_39 = arith.constant dense<0.000000e+00> : vector<4x16xf32>
    %108 = vector.multi_reduction <add>, %107, %cst_39 [2] : vector<4x16x16xf32> to vector<4x16xf32>
    %109 = vector.shape_cast %108 : vector<4x16xf32> to vector<4x16x1xf32>
    %cst_40 = arith.constant 1.000000e+00 : f32
    %110 = vector.broadcast %cst_40 : f32 to vector<4x16x1xf32>
    %111 = arith.divf %110, %109 : vector<4x16x1xf32>
    %112 = vector.broadcast %111 : vector<4x16x1xf32> to vector<4x16x16xf32>
    %113 = arith.mulf %107, %112 : vector<4x16x16xf32>
    %114 = vector.extract_strided_slice %2 {offsets = [0, 0, 24], sizes = [4, 16, 8], strides = [1, 1, 1]} : vector<4x16x32xf32> to vector<4x16x8xf32>
    "tpu.trace_start"() <{level = 10 : i32, message = "wnm,wmd->wnd"}> : () -> ()
    %cst_41 = arith.constant dense<0.000000e+00> : vector<4x16x8xf32>
    %115 = tpu.matmul %113, %114, %cst_41 {dimension_numbers = #tpu.dot_dimension_numbers<[2], [1], [1], [2], [0, 0, 0, 1, 1, 2], [0], [0]>} : vector<4x16x16xf32>, vector<4x16x8xf32>, vector<4x16x8xf32> -> vector<4x16x8xf32>
    "tpu.trace_stop"() : () -> ()
    %116 = vector.shape_cast %115 : vector<4x16x8xf32> to vector<64x8xf32>
    %c0_42 = arith.constant 0 : index
    %c24 = arith.constant 24 : index
    %117 = vector.load %arg11[%c0_42, %c24] : memref<64x32xf32, #tpu.memory_space<vmem>>, vector<64x8xf32>
    tpu.vector_store %arg11[%c0_42, %c24], %116 {strides = array<i32>} : memref<64x32xf32, #tpu.memory_space<vmem>>, vector<64x8xf32>,
    %c0_43 = arith.constant 0 : index
    %c0_44 = arith.constant 0 : index
    %118 = vector.load %arg11[%c0_43, %c0_44] : memref<64x32xf32, #tpu.memory_space<vmem>>, vector<64x32xf32>
    %c0_45 = arith.constant 0 : index
    %c0_46 = arith.constant 0 : index
    %119 = vector.load %arg8[%c0_45, %c0_46] : memref<32x32xf32, #tpu.memory_space<vmem>>, vector<32x32xf32>
    %cst_47 = arith.constant dense<0.000000e+00> : vector<64x32xf32>
    %120 = tpu.matmul %118, %119, %cst_47 {dimension_numbers = #tpu.dot_dimension_numbers<[1], [0], [0], [1], [0, 0, 1, 1], [], []>} : vector<64x32xf32>, vector<32x32xf32>, vector<64x32xf32> -> vector<64x32xf32>
    %c0_48 = arith.constant 0 : index
    %c0_49 = arith.constant 0 : index
    %121 = vector.load %arg9[%c0_48, %c0_49] : memref<1x32xf32, #tpu.memory_space<vmem>>, vector<1x32xf32>
    %122 = vector.broadcast %121 : vector<1x32xf32> to vector<64x32xf32>
    %123 = arith.addf %120, %122 : vector<64x32xf32>
    %124 = vector.shape_cast %123 : vector<64x32xf32> to vector<4x16x32xf32>
    %c0_50 = arith.constant 0 : index
    %c0_51 = arith.constant 0 : index
    %c0_52 = arith.constant 0 : index
    %125 = vector.load %arg10[%c0_50, %c0_51, %c0_52] : memref<4x16x32xf32, #tpu.memory_space<vmem>>, vector<4x16x32xf32>
    tpu.vector_store %arg10[%c0_50, %c0_51, %c0_52], %124 {strides = array<i32>} : memref<4x16x32xf32, #tpu.memory_space<vmem>>, vector<4x16x32xf32>,
    return
  }
  func.func @transform_0(%arg0: i32) -> (i32, i32, i32) {
    %c0_i32 = arith.constant 0 : i32
    %c0_i32_0 = arith.constant 0 : i32
    %c0_i32_1 = arith.constant 0 : i32
    return %arg0, %c0_i32, %c0_i32_0 : i32, i32, i32
  }
  func.func @transform_1(%arg0: i32) -> (i32, i32, i32) {
    %c0_i32 = arith.constant 0 : i32
    %c0_i32_0 = arith.constant 0 : i32
    %c0_i32_1 = arith.constant 0 : i32
    return %arg0, %c0_i32, %c0_i32_0 : i32, i32, i32
  }
  func.func @transform_2(%arg0: i32) -> (i32, i32) {
    %c0_i32 = arith.constant 0 : i32
    %c0_i32_0 = arith.constant 0 : i32
    %c0_i32_1 = arith.constant 0 : i32
    return %c0_i32, %c0_i32_0 : i32, i32
  }
  func.func @transform_3(%arg0: i32) -> (i32, i32) {
    %c0_i32 = arith.constant 0 : i32
    %c0_i32_0 = arith.constant 0 : i32
    %c0_i32_1 = arith.constant 0 : i32
    return %c0_i32, %c0_i32_0 : i32, i32
  }
  func.func @transform_4(%arg0: i32) -> (i32, i32) {
    %c0_i32 = arith.constant 0 : i32
    %c0_i32_0 = arith.constant 0 : i32
    %c0_i32_1 = arith.constant 0 : i32
    return %c0_i32, %c0_i32_0 : i32, i32
  }
  func.func @transform_5(%arg0: i32) -> (i32, i32) {
    %c0_i32 = arith.constant 0 : i32
    %c0_i32_0 = arith.constant 0 : i32
    %c0_i32_1 = arith.constant 0 : i32
    return %c0_i32, %c0_i32_0 : i32, i32
  }
  func.func @transform_6(%arg0: i32) -> (i32, i32, i32, i32) {
    %c0_i32 = arith.constant 0 : i32
    %c0_i32_0 = arith.constant 0 : i32
    %c0_i32_1 = arith.constant 0 : i32
    %c0_i32_2 = arith.constant 0 : i32
    %c0_i32_3 = arith.constant 0 : i32
    return %c0_i32, %c0_i32_0, %c0_i32_1, %c0_i32_2 : i32, i32, i32, i32
  }
  func.func @transform_7(%arg0: i32) -> (i32, i32) {
    %c0_i32 = arith.constant 0 : i32
    %c0_i32_0 = arith.constant 0 : i32
    %c0_i32_1 = arith.constant 0 : i32
    return %c0_i32, %c0_i32_0 : i32, i32
  }
  func.func @transform_8(%arg0: i32) -> (i32, i32) {
    %c0_i32 = arith.constant 0 : i32
    %c0_i32_0 = arith.constant 0 : i32
    %c0_i32_1 = arith.constant 0 : i32
    return %c0_i32, %c0_i32_0 : i32, i32
  }
  func.func @transform_9(%arg0: i32) -> (i32, i32, i32) {
    %c0_i32 = arith.constant 0 : i32
    %c0_i32_0 = arith.constant 0 : i32
    %c0_i32_1 = arith.constant 0 : i32
    return %arg0, %c0_i32, %c0_i32_0 : i32, i32, i32
  }
}

</mosaic_0001>

<llo_original>
// kernel: window_attention_forward.1
$region0: #{window_attention_forward.1}
  #allocation0 [shape = 'u32[]', space=smem, size = 0x4, offset = 0x4, fixed_abs, tag = 'smem constant byte address 0x4 - core index']
  #allocation1 [shape = 'u32[72,128]{1,0:T(1,128)}', space=vmem, size = 0x9000, scoped, tag = 'internal scratch']
  #allocation2 [shape = 'f32[64,32]{1,0:T(8,128)}', space=vmem, size = 0x8000, scoped, tag = 'scratch operand']
  %s0 = inlined_call_operand.vmem [shape: f32[8,16,32], index: 0, kind: input, shape index: {}]
  %s1 = inlined_call_operand.vmem [shape: f32[8,16,32], index: 1, kind: input, shape index: {}]
  %s2 = inlined_call_operand.vmem [shape: f32[32,32], index: 2, kind: input, shape index: {}]
  %s3 = inlined_call_operand.vmem [shape: f32[1,32], index: 3, kind: input, shape index: {}]
  %s4 = inlined_call_operand.vmem [shape: f32[32,32], index: 4, kind: input, shape index: {}]
  %s5 = inlined_call_operand.vmem [shape: f32[1,32], index: 5, kind: input, shape index: {}]
  %s6 = inlined_call_operand.vmem [shape: f32[4,4,16,16], index: 6, kind: input, shape index: {}]
  %s7 = inlined_call_operand.vmem [shape: f32[32,32], index: 7, kind: input, shape index: {}]
  %s8 = inlined_call_operand.vmem [shape: f32[1,32], index: 8, kind: input, shape index: {}]
  %s9 = inlined_call_operand.hbm [shape: f32[8,16,32], index: 9, kind: output, shape index: {}]
  %s10 = sld [smem:[#allocation0]]
  $region69: #{window_attention_forward.1} parent=0
    _
  %s12 = ssub.s32 1, %s10
  %s13 = scalar_select 0, %s12, %s10
  $region1: #{window_attention_forward.1} parent=0
    #allocation3 [shape = 'u8[65536]{0}', space=vmem, size = 0x10000, scoped, tag = 'output window, operand 0']
    #allocation4 [shape = 's32[2]{0}', space=sflag, size = 0x8, scoped, tag = 'scoped memory for window_attention_forward.1']
    %14 = vsyncpa [#allocation4], 0
    %s15 = scalar_lea.sflag [#allocation4], 1
    %16 = vsyncpa %s15, 0
    loop: start=0, step=1, limit=4
    $region2: #{window_attention_forward.1} parent=1 // loop_pre_header
      _
    $region3: #{window_attention_forward.1} parent=1 // loop_header
      %s18 = sphi 0, %s22
      %p19 = scmp.ge.s32.totalorder %s18, 4
      %s28 = sphi 0, %s30
      %s31 = sphi 0, %s28
      %s32 = sphi 0, %s31
      %s48 = sphi 0, %s32
      %s54 = sphi 0, %s56
      %s57 = sphi 0, %s54
      %s58 = sphi 0, %s57
      %s74 = sphi 0, %s58
      %s78 = sphi 0, %s78
      %s80 = sphi 0, %s78
      %s81 = sphi 0, %s80
      %s95 = sphi 0, %s81
      %s99 = sphi 0, %s99
      %s101 = sphi 0, %s99
      %s102 = sphi 0, %s101
      %s116 = sphi 0, %s102
      %s120 = sphi 0, %s120
      %s122 = sphi 0, %s120
      %s123 = sphi 0, %s122
      %s137 = sphi 0, %s123
      %s141 = sphi 0, %s141
      %s143 = sphi 0, %s141
      %s144 = sphi 0, %s143
      %s158 = sphi 0, %s144
      %s162 = sphi 0, %s162
      %s164 = sphi 0, %s162
      %s165 = sphi 0, %s164
      %s179 = sphi 0, %s165
      %s183 = sphi 0, %s183
      %s185 = sphi 0, %s183
      %s186 = sphi 0, %s185
      %s200 = sphi 0, %s186
      %s204 = sphi 0, %s204
      %s206 = sphi 0, %s204
      %s207 = sphi 0, %s206
      %s221 = sphi 0, %s207
      %s227 = sphi 0, %s229
      %s230 = sphi 0, %s227
      %s231 = sphi 0, %s230
      %s247 = sphi 0, %s231
    $region4: #{window_attention_forward.1} parent=1 // loop_header_branch
      %21 = sbr.rel (%p19) target = $region8
    $region5: #{window_attention_forward.1} parent=1 // loop_body
      %s23 = ssub.s32 %s18, 1
      %s24 = ssub.s32 %s18, 2
      %s25 = sadd.s32 %s18, 1
      %s26 = ssub.s32 %s18, %s25
      %p27 = scmp.eq.s32.totalorder %s26, 0
      %s29 = sadd.s32 %s28, 1
      %s30 = scalar_select %p27, %s28, %s29
      %p33 = pneg %p27
      %p34 = scmp.eq.s32.totalorder %s18, 1
      %p35 = por %p33, %p34
      %p36 = scmp.ne.s32.totalorder %s28, %s31
      %p37 = scmp.eq.s32.totalorder %s18, 0
      %p38 = por %p36, %p37
      %p39 = scmp.ne.s32.totalorder %s28, %s31
      %p40 = scmp.eq.s32.totalorder %s23, 1
      %p41 = por %p39, %p40
      %p42 = scmp.ne.s32.totalorder %s31, %s32
      %p43 = scmp.eq.s32.totalorder %s23, 0
      %p44 = por %p42, %p43
      %p45 = scmp.ne.s32.totalorder %s31, %s32
      %p46 = scmp.eq.s32.totalorder %s24, 1
      %p47 = por %p45, %p46
      %p49 = scmp.ne.s32.totalorder %s32, %s48
      %p50 = scmp.eq.s32.totalorder %s24, 0
      %p51 = por %p49, %p50
      %s52 = ssub.s32 %s18, %s25
      %p53 = scmp.eq.s32.totalorder %s52, 0
      %s55 = sadd.s32 %s54, 1
      %s56 = scalar_select %p53, %s54, %s55
      %p59 = pneg %p53
      %p60 = scmp.eq.s32.totalorder %s18, 1
      %p61 = por %p59, %p60
      %p62 = scmp.ne.s32.totalorder %s54, %s57
      %p63 = scmp.eq.s32.totalorder %s18, 0
      %p64 = por %p62, %p63
      %p65 = scmp.ne.s32.totalorder %s54, %s57
      %p66 = scmp.eq.s32.totalorder %s23, 1
      %p67 = por %p65, %p66
      %p68 = scmp.ne.s32.totalorder %s57, %s58
      %p69 = scmp.eq.s32.totalorder %s23, 0
      %p70 = por %p68, %p69
      %p71 = scmp.ne.s32.totalorder %s57, %s58
      %p72 = scmp.eq.s32.totalorder %s24, 1
      %p73 = por %p71, %p72
      %p75 = scmp.ne.s32.totalorder %s58, %s74
      %p76 = scmp.eq.s32.totalorder %s24, 0
      %p77 = por %p75, %p76
      %s79 = sadd.s32 %s78, 1
      %p82 = scmp.eq.s32.totalorder %s18, 1
      %p83 = scmp.ne.s32.totalorder %s78, %s80
      %p84 = scmp.eq.s32.totalorder %s18, 0
      %p85 = por %p83, %p84
      %p86 = scmp.ne.s32.totalorder %s78, %s80
      %p87 = scmp.eq.s32.totalorder %s23, 1
      %p88 = por %p86, %p87
      %p89 = scmp.ne.s32.totalorder %s80, %s81
      %p90 = scmp.eq.s32.totalorder %s23, 0
      %p91 = por %p89, %p90
      %p92 = scmp.ne.s32.totalorder %s80, %s81
      %p93 = scmp.eq.s32.totalorder %s24, 1
      %p94 = por %p92, %p93
      %p96 = scmp.ne.s32.totalorder %s81, %s95
      %p97 = scmp.eq.s32.totalorder %s24, 0
      %p98 = por %p96, %p97
      %s100 = sadd.s32 %s99, 1
      %p103 = scmp.eq.s32.totalorder %s18, 1
      %p104 = scmp.ne.s32.totalorder %s99, %s101
      %p105 = scmp.eq.s32.totalorder %s18, 0
      %p106 = por %p104, %p105
      %p107 = scmp.ne.s32.totalorder %s99, %s101
      %p108 = scmp.eq.s32.totalorder %s23, 1
      %p109 = por %p107, %p108
      %p110 = scmp.ne.s32.totalorder %s101, %s102
      %p111 = scmp.eq.s32.totalorder %s23, 0
      %p112 = por %p110, %p111
      %p113 = scmp.ne.s32.totalorder %s101, %s102
      %p114 = scmp.eq.s32.totalorder %s24, 1
      %p115 = por %p113, %p114
      %p117 = scmp.ne.s32.totalorder %s102, %s116
      %p118 = scmp.eq.s32.totalorder %s24, 0
      %p119 = por %p117, %p118
      %s121 = sadd.s32 %s120, 1
      %p124 = scmp.eq.s32.totalorder %s18, 1
      %p125 = scmp.ne.s32.totalorder %s120, %s122
      %p126 = scmp.eq.s32.totalorder %s18, 0
      %p127 = por %p125, %p126
      %p128 = scmp.ne.s32.totalorder %s120, %s122
      %p129 = scmp.eq.s32.totalorder %s23, 1
      %p130 = por %p128, %p129
      %p131 = scmp.ne.s32.totalorder %s122, %s123
      %p132 = scmp.eq.s32.totalorder %s23, 0
      %p133 = por %p131, %p132
      %p134 = scmp.ne.s32.totalorder %s122, %s123
      %p135 = scmp.eq.s32.totalorder %s24, 1
      %p136 = por %p134, %p135
      %p138 = scmp.ne.s32.totalorder %s123, %s137
      %p139 = scmp.eq.s32.totalorder %s24, 0
      %p140 = por %p138, %p139
      %s142 = sadd.s32 %s141, 1
      %p145 = scmp.eq.s32.totalorder %s18, 1
      %p146 = scmp.ne.s32.totalorder %s141, %s143
      %p147 = scmp.eq.s32.totalorder %s18, 0
      %p148 = por %p146, %p147
      %p149 = scmp.ne.s32.totalorder %s141, %s143
      %p150 = scmp.eq.s32.totalorder %s23, 1
      %p151 = por %p149, %p150
      %p152 = scmp.ne.s32.totalorder %s143, %s144
      %p153 = scmp.eq.s32.totalorder %s23, 0
      %p154 = por %p152, %p153
      %p155 = scmp.ne.s32.totalorder %s143, %s144
      %p156 = scmp.eq.s32.totalorder %s24, 1
      %p157 = por %p155, %p156
      %p159 = scmp.ne.s32.totalorder %s144, %s158
      %p160 = scmp.eq.s32.totalorder %s24, 0
      %p161 = por %p159, %p160
      %s163 = sadd.s32 %s162, 1
      %p166 = scmp.eq.s32.totalorder %s18, 1
      %p167 = scmp.ne.s32.totalorder %s162, %s164
      %p168 = scmp.eq.s32.totalorder %s18, 0
      %p169 = por %p167, %p168
      %p170 = scmp.ne.s32.totalorder %s162, %s164
      %p171 = scmp.eq.s32.totalorder %s23, 1
      %p172 = por %p170, %p171
      %p173 = scmp.ne.s32.totalorder %s164, %s165
      %p174 = scmp.eq.s32.totalorder %s23, 0
      %p175 = por %p173, %p174
      %p176 = scmp.ne.s32.totalorder %s164, %s165
      %p177 = scmp.eq.s32.totalorder %s24, 1
      %p178 = por %p176, %p177
      %p180 = scmp.ne.s32.totalorder %s165, %s179
      %p181 = scmp.eq.s32.totalorder %s24, 0
      %p182 = por %p180, %p181
      %s184 = sadd.s32 %s183, 1
      %p187 = scmp.eq.s32.totalorder %s18, 1
      %p188 = scmp.ne.s32.totalorder %s183, %s185
      %p189 = scmp.eq.s32.totalorder %s18, 0
      %p190 = por %p188, %p189
      %p191 = scmp.ne.s32.totalorder %s183, %s185
      %p192 = scmp.eq.s32.totalorder %s23, 1
      %p193 = por %p191, %p192
      %p194 = scmp.ne.s32.totalorder %s185, %s186
      %p195 = scmp.eq.s32.totalorder %s23, 0
      %p196 = por %p194, %p195
      %p197 = scmp.ne.s32.totalorder %s185, %s186
      %p198 = scmp.eq.s32.totalorder %s24, 1
      %p199 = por %p197, %p198
      %p201 = scmp.ne.s32.totalorder %s186, %s200
      %p202 = scmp.eq.s32.totalorder %s24, 0
      %p203 = por %p201, %p202
      %s205 = sadd.s32 %s204, 1
      %p208 = scmp.eq.s32.totalorder %s18, 1
      %p209 = scmp.ne.s32.totalorder %s204, %s206
      %p210 = scmp.eq.s32.totalorder %s18, 0
      %p211 = por %p209, %p210
      %p212 = scmp.ne.s32.totalorder %s204, %s206
      %p213 = scmp.eq.s32.totalorder %s23, 1
      %p214 = por %p212, %p213
      %p215 = scmp.ne.s32.totalorder %s206, %s207
      %p216 = scmp.eq.s32.totalorder %s23, 0
      %p217 = por %p215, %p216
      %p218 = scmp.ne.s32.totalorder %s206, %s207
      %p219 = scmp.eq.s32.totalorder %s24, 1
      %p220 = por %p218, %p219
      %p222 = scmp.ne.s32.totalorder %s207, %s221
      %p223 = scmp.eq.s32.totalorder %s24, 0
      %p224 = por %p222, %p223
      %s225 = ssub.s32 %s18, %s25
      %p226 = scmp.eq.s32.totalorder %s225, 0
      %s228 = sadd.s32 %s227, 1
      %s229 = scalar_select %p226, %s227, %s228
      %p232 = pneg %p226
      %p233 = scmp.eq.s32.totalorder %s18, 1
      %p234 = por %p232, %p233
      %p235 = scmp.ne.s32.totalorder %s227, %s230
      %p236 = scmp.eq.s32.totalorder %s18, 0
      %p237 = por %p235, %p236
      %p238 = scmp.ne.s32.totalorder %s227, %s230
      %p239 = scmp.eq.s32.totalorder %s23, 1
      %p240 = por %p238, %p239
      %p241 = scmp.ne.s32.totalorder %s230, %s231
      %p242 = scmp.eq.s32.totalorder %s23, 0
      %p243 = por %p241, %p242
      %p244 = scmp.ne.s32.totalorder %s230, %s231
      %p245 = scmp.eq.s32.totalorder %s24, 1
      %p246 = por %p244, %p245
      %p248 = scmp.ne.s32.totalorder %s231, %s247
      %p249 = scmp.eq.s32.totalorder %s24, 0
      %p250 = por %p248, %p249
      %p251 = scmp.le.s32.totalorder 1, %s18
      %p252 = scmp.lt.s32.totalorder %s18, 3
      %p253 = pnand %p251, %p252
      %p254 = pneg %p253
      // Predicated region
      $region9: #{window_attention_forward.1} parent=5 // pred_check
        _
      $region10: #{window_attention_forward.1} parent=5 // pred_check_branch
        %256 = sbr.rel (%p253) target = $region12
      $region11: #{window_attention_forward.1} parent=5 // pred_region
        %s257 = ssub.s32 %s18, 1
        // Predicated region
        $region13: #{window_attention_forward.1} parent=11 // pred_check
          %p258 = pneg %p91
        $region14: #{window_attention_forward.1} parent=11 // pred_check_branch
          %260 = sbr.rel (%p258) target = $region16
        $region15: #{window_attention_forward.1} parent=11 // pred_region
          _
        $region16: #{window_attention_forward.1} parent=11 // pred_fallthru
          _
        // Predicated region
        $region17: #{window_attention_forward.1} parent=11 // pred_check
          %p261 = pneg %p112
        $region18: #{window_attention_forward.1} parent=11 // pred_check_branch
          %263 = sbr.rel (%p261) target = $region20
        $region19: #{window_attention_forward.1} parent=11 // pred_region
          _
        $region20: #{window_attention_forward.1} parent=11 // pred_fallthru
          _
        // Predicated region
        $region21: #{window_attention_forward.1} parent=11 // pred_check
          %p264 = pneg %p133
        $region22: #{window_attention_forward.1} parent=11 // pred_check_branch
          %266 = sbr.rel (%p264) target = $region24
        $region23: #{window_attention_forward.1} parent=11 // pred_region
          _
        $region24: #{window_attention_forward.1} parent=11 // pred_fallthru
          _
        // Predicated region
        $region25: #{window_attention_forward.1} parent=11 // pred_check
          %p267 = pneg %p154
        $region26: #{window_attention_forward.1} parent=11 // pred_check_branch
          %269 = sbr.rel (%p267) target = $region28
        $region27: #{window_attention_forward.1} parent=11 // pred_region
          _
        $region28: #{window_attention_forward.1} parent=11 // pred_fallthru
          _
        // Predicated region
        $region29: #{window_attention_forward.1} parent=11 // pred_check
          %p270 = pneg %p175
        $region30: #{window_attention_forward.1} parent=11 // pred_check_branch
          %272 = sbr.rel (%p270) target = $region32
        $region31: #{window_attention_forward.1} parent=11 // pred_region
          _
        $region32: #{window_attention_forward.1} parent=11 // pred_fallthru
          _
        // Predicated region
        $region33: #{window_attention_forward.1} parent=11 // pred_check
          %p273 = pneg %p196
        $region34: #{window_attention_forward.1} parent=11 // pred_check_branch
          %275 = sbr.rel (%p273) target = $region36
        $region35: #{window_attention_forward.1} parent=11 // pred_region
          _
        $region36: #{window_attention_forward.1} parent=11 // pred_fallthru
          _
        // Predicated region
        $region37: #{window_attention_forward.1} parent=11 // pred_check
          %p276 = pneg %p217
        $region38: #{window_attention_forward.1} parent=11 // pred_check_branch
          %278 = sbr.rel (%p276) target = $region40
        $region39: #{window_attention_forward.1} parent=11 // pred_region
          _
        $region40: #{window_attention_forward.1} parent=11 // pred_fallthru
          _
      $region12: #{window_attention_forward.1} parent=5 // pred_fallthru
        _
      %p279 = scmp.lt.s32.totalorder %s18, 2
      // Predicated region
      $region41: #{window_attention_forward.1} parent=5 // pred_check
        %p280 = pneg %p279
      $region42: #{window_attention_forward.1} parent=5 // pred_check_branch
        %282 = sbr.rel (%p280) target = $region44
      $region43: #{window_attention_forward.1} parent=5 // pred_region
        // Predicated region
        $region45: #{window_attention_forward.1} parent=43 // pred_check
          %p283 = pneg %p38
        $region46: #{window_attention_forward.1} parent=43 // pred_check_branch
          %285 = sbr.rel (%p283) target = $region48
        $region47: #{window_attention_forward.1} parent=43 // pred_region
          %s286 = smul.u32 4, %s18
          %p287 = scmp.lt.s32.totalorder %s286, 7
          %s288 = scalar_select %p287, %s286, 7
          %s289 = smul.addr %s288, 2
          %s290 = smul.addr %s289, 8
          %s291 = scalar_lea.vmem %s0, %s290
          %s292 = smul.u32 4, %s18
        $region48: #{window_attention_forward.1} parent=43 // pred_fallthru
          _
        // Predicated region
        $region49: #{window_attention_forward.1} parent=43 // pred_check
          %p293 = pneg %p64
        $region50: #{window_attention_forward.1} parent=43 // pred_check_branch
          %295 = sbr.rel (%p293) target = $region52
        $region51: #{window_attention_forward.1} parent=43 // pred_region
          %s296 = smul.u32 4, %s18
          %p297 = scmp.lt.s32.totalorder %s296, 7
          %s298 = scalar_select %p297, %s296, 7
          %s299 = smul.addr %s298, 2
          %s300 = smul.addr %s299, 8
          %s301 = scalar_lea.vmem %s1, %s300
          %s302 = smul.u32 4, %s18
        $region52: #{window_attention_forward.1} parent=43 // pred_fallthru
          _
      $region44: #{window_attention_forward.1} parent=5 // pred_fallthru
        _
      %p303 = scmp.le.s32.totalorder 1, %s18
      %p304 = scmp.lt.s32.totalorder %s18, 3
      %p305 = pnand %p303, %p304
      %p306 = pneg %p305
      // Predicated region
      $region53: #{window_attention_forward.1} parent=5 // pred_check
        _
      $region54: #{window_attention_forward.1} parent=5 // pred_check_branch
        %308 = sbr.rel (%p305) target = $region56
      $region55: #{window_attention_forward.1} parent=5 // pred_region
        %s309 = ssub.s32 %s18, 1
        %s310 = smul.u32 4, %s23
        %p311 = scmp.lt.s32.totalorder %s310, 7
        %s312 = scalar_select %p311, %s310, 7
        %s313 = smul.addr %s312, 2
        %s314 = smul.addr %s313, 8
        %s315 = scalar_lea.vmem %s0, %s314
        %p316 = pneg %p44
        %p317 = pneg %p41
        %s318 = smul.u32 4, %s23
        %p319 = scmp.lt.s32.totalorder %s318, 7
        %s320 = scalar_select %p319, %s318, 7
        %s321 = smul.addr %s320, 2
        %s322 = smul.addr %s321, 8
        %s323 = scalar_lea.vmem %s1, %s322
        %p324 = pneg %p70
        %p325 = pneg %p67
        %p326 = pneg %p91
        %p327 = pneg %p88
        %p328 = pneg %p112
        %p329 = pneg %p109
        %p330 = pneg %p133
        %p331 = pneg %p130
        %p332 = pneg %p154
        %p333 = pneg %p151
        %p334 = pneg %p175
        %p335 = pneg %p172
        %p336 = pneg %p196
        %p337 = pneg %p193
        %p338 = pneg %p217
        %p339 = pneg %p214
        %p340 = pneg %p243
        %p341 = pneg %p240
        %s342 = sand.u32 %s230, 1
        %s343 = scalar_lea.sflag [#allocation4], %s342
        %s344 = sand.u32 %s230, 1
        %s345 = smul.addr %s344, 64
        %s346 = scalar_lea.vmem [#allocation3], %s345
        %s347 = smul.u32 4, %s23
        %p348 = scmp.lt.s32.totalorder %s347, 7
        %s349 = scalar_select %p348, %s347, 7
        %s350 = smul.addr %s349, 2
        %s351 = smul.addr %s350, 8
        %s352 = scalar_lea.vmem %s0, %s351
        %s353 = smul.u32 4, %s23
        %s354 = smul.u32 4, %s23
        %p355 = scmp.lt.s32.totalorder %s354, 7
        %s356 = scalar_select %p355, %s354, 7
        %s357 = smul.addr %s356, 2
        %s358 = smul.addr %s357, 8
        %s359 = scalar_lea.vmem %s1, %s358
        %s360 = smul.u32 4, %s23
        %s361 = smul.u32 4, %s23
        %v362 = vld [vmem:[%s352] sm:$0xff]
        %v363 = vld [vmem:[%s352 + $0x8] sm:$0xff]
        %v364 = vld [vmem:[%s352 + $0x10] sm:$0xff]
        %v365 = vld [vmem:[%s352 + $0x18] sm:$0xff]
        %v366 = vld [vmem:[%s352 + $0x20] sm:$0xff]
        %v367 = vld [vmem:[%s352 + $0x28] sm:$0xff]
        %v368 = vld [vmem:[%s352 + $0x30] sm:$0xff]
        %v369 = vld [vmem:[%s352 + $0x38] sm:$0xff]
        %v370 = vld [vmem:[%s359] sm:$0xff]
        %v371 = vld [vmem:[%s359 + $0x8] sm:$0xff]
        %v372 = vld [vmem:[%s359 + $0x10] sm:$0xff]
        %v373 = vld [vmem:[%s359 + $0x18] sm:$0xff]
        %v374 = vld [vmem:[%s359 + $0x20] sm:$0xff]
        %v375 = vld [vmem:[%s359 + $0x28] sm:$0xff]
        %v376 = vld [vmem:[%s359 + $0x30] sm:$0xff]
        %v377 = vld [vmem:[%s359 + $0x38] sm:$0xff]
        %v378 = vld [vmem:[%s2] sm:$0xff]
        %v379 = vld [vmem:[%s2 + $0x8] sm:$0xff]
        %v380 = vld [vmem:[%s2 + $0x10] sm:$0xff]
        %v381 = vld [vmem:[%s2 + $0x18] sm:$0xff]
        %v382 = vld [vmem:[%s3] sm:$0x1]
        %v384 = vperm.slane %v382, 0
        %vm386 = vcmask 261120
        %v388 = vsel %vm386, %v362, 0
        %v391 = vsel %vm386, %v363, 0
        %v394 = vsel %vm386, %v364, 0
        %v397 = vsel %vm386, %v365, 0
        %v400 = vsel %vm386, %v366, 0
        %v403 = vsel %vm386, %v367, 0
        %v406 = vsel %vm386, %v368, 0
        %v409 = vsel %vm386, %v369, 0
        %411 = vmatpush.msra.mxu0 0.0
        %412 = vmatpush.msra.mxu0 0.0
        %413 = vmatpush.msra.mxu0 0.0
        %414 = vmatpush.msra.mxu0 0.0
        %415 = vmatpush.msra.mxu0 0.0
        %416 = vmatpush.msra.mxu0 0.0
        %417 = vmatpush.msra.mxu0 0.0
        %418 = vmatpush.msra.mxu0 0.0
        %419 = vmatpush.msra.mxu0 0.0
        %420 = vmatpush.msra.mxu0 0.0
        %421 = vmatpush.msra.mxu0 0.0
        %422 = vmatpush.msra.mxu0 0.0
        %423 = vmatpush.msra.mxu0 %v381
        %424 = vmatpush.msra.mxu0 %v380
        %425 = vmatpush.msra.mxu0 %v379
        %426 = vmatpush.msra.mxu0 %v378
        %427 = vmatmul.f32.gmra.mxu0 %v388
        %v428 = vpop.f32.mrf.mxu0
        %v429 = vadd.f32 %v384, %v428
        %430 = vmatmul.f32.gmra.mxu0 %v391
        %v431 = vpop.f32.mrf.mxu0
        %v432 = vadd.f32 %v384, %v431
        %433 = vmatmul.f32.gmra.mxu0 %v394
        %v434 = vpop.f32.mrf.mxu0
        %v435 = vadd.f32 %v384, %v434
        %436 = vmatmul.f32.gmra.mxu0 %v397
        %v437 = vpop.f32.mrf.mxu0
        %v438 = vadd.f32 %v384, %v437
        %439 = vmatmul.f32.gmra.mxu0 %v400
        %v440 = vpop.f32.mrf.mxu0
        %v441 = vadd.f32 %v384, %v440
        %442 = vmatmul.f32.gmra.mxu0 %v403
        %v443 = vpop.f32.mrf.mxu0
        %v444 = vadd.f32 %v384, %v443
        %445 = vmatmul.f32.gmra.mxu0 %v406
        %v446 = vpop.f32.mrf.mxu0
        %v447 = vadd.f32 %v384, %v446
        %448 = vmatmul.f32.gmra.mxu0 %v409
        %v449 = vpop.f32.mrf.mxu0
        %v450 = vadd.f32 %v384, %v449
        %451 = vdwg.mxu0
        %v452 = vld [vmem:[%s4] sm:$0xff]
        %v453 = vld [vmem:[%s4 + $0x8] sm:$0xff]
        %v454 = vld [vmem:[%s4 + $0x10] sm:$0xff]
        %v455 = vld [vmem:[%s4 + $0x18] sm:$0xff]
        %v456 = vld [vmem:[%s5] sm:$0x1]
        %v458 = vperm.slane %v456, 0
        %460 = vmatpush.msra.mxu0 0.0
        %461 = vmatpush.msra.mxu0 0.0
        %462 = vmatpush.msra.mxu0 0.0
        %463 = vmatpush.msra.mxu0 0.0
        %464 = vmatpush.msra.mxu0 0.0
        %465 = vmatpush.msra.mxu0 0.0
        %466 = vmatpush.msra.mxu0 0.0
        %467 = vmatpush.msra.mxu0 0.0
        %468 = vmatpush.msra.mxu0 0.0
        %469 = vmatpush.msra.mxu0 0.0
        %470 = vmatpush.msra.mxu0 0.0
        %471 = vmatpush.msra.mxu0 0.0
        %472 = vmatpush.msra.mxu0 %v455
        %473 = vmatpush.msra.mxu0 %v454
        %474 = vmatpush.msra.mxu0 %v453
        %475 = vmatpush.msra.mxu0 %v452
        %476 = vmatmul.f32.gmra.mxu0 %v388
        %v477 = vpop.f32.mrf.mxu0
        %v478 = vadd.f32 %v458, %v477
        %479 = vmatmul.f32.gmra.mxu0 %v391
        %v480 = vpop.f32.mrf.mxu0
        %v481 = vadd.f32 %v458, %v480
        %482 = vmatmul.f32.gmra.mxu0 %v394
        %v483 = vpop.f32.mrf.mxu0
        %v484 = vadd.f32 %v458, %v483
        %485 = vmatmul.f32.gmra.mxu0 %v397
        %v486 = vpop.f32.mrf.mxu0
        %v487 = vadd.f32 %v458, %v486
        %488 = vmatmul.f32.gmra.mxu0 %v400
        %v489 = vpop.f32.mrf.mxu0
        %v490 = vadd.f32 %v458, %v489
        %491 = vmatmul.f32.gmra.mxu0 %v403
        %v492 = vpop.f32.mrf.mxu0
        %v493 = vadd.f32 %v458, %v492
        %494 = vmatmul.f32.gmra.mxu0 %v406
        %v495 = vpop.f32.mrf.mxu0
        %v496 = vadd.f32 %v458, %v495
        %497 = vmatmul.f32.gmra.mxu0 %v409
        %v498 = vpop.f32.mrf.mxu0
        %v499 = vadd.f32 %v458, %v498
        %500 = vdwg.mxu0
        %v501 = vld [vmem:[%s6] sm:$0xff]
        %v502 = vld [vmem:[%s6 + $0x8] sm:$0xff]
        %v503 = vld [vmem:[%s6 + $0x10] sm:$0xff]
        %v504 = vld [vmem:[%s6 + $0x18] sm:$0xff]
        %v505 = vld [vmem:[%s6 + $0x20] sm:$0xff]
        %v506 = vld [vmem:[%s6 + $0x28] sm:$0xff]
        %v507 = vld [vmem:[%s6 + $0x30] sm:$0xff]
        %v508 = vld [vmem:[%s6 + $0x38] sm:$0xff]
        %v509 = vld [vmem:[%s6 + $0x40] sm:$0xff]
        %v510 = vld [vmem:[%s6 + $0x48] sm:$0xff]
        %v511 = vld [vmem:[%s6 + $0x50] sm:$0xff]
        %v512 = vld [vmem:[%s6 + $0x58] sm:$0xff]
        %v513 = vld [vmem:[%s6 + $0x60] sm:$0xff]
        %v514 = vld [vmem:[%s6 + $0x68] sm:$0xff]
        %v515 = vld [vmem:[%s6 + $0x70] sm:$0xff]
        %v516 = vld [vmem:[%s6 + $0x78] sm:$0xff]
        %v517 = vld [vmem:[%s6 + $0x80] sm:$0xff]
        %v518 = vld [vmem:[%s6 + $0x88] sm:$0xff]
        %v519 = vld [vmem:[%s6 + $0x90] sm:$0xff]
        %v520 = vld [vmem:[%s6 + $0x98] sm:$0xff]
        %v521 = vld [vmem:[%s6 + $0xa0] sm:$0xff]
        %v522 = vld [vmem:[%s6 + $0xa8] sm:$0xff]
        %v523 = vld [vmem:[%s6 + $0xb0] sm:$0xff]
        %v524 = vld [vmem:[%s6 + $0xb8] sm:$0xff]
        %v525 = vld [vmem:[%s6 + $0xc0] sm:$0xff]
        %v526 = vld [vmem:[%s6 + $0xc8] sm:$0xff]
        %v527 = vld [vmem:[%s6 + $0xd0] sm:$0xff]
        %v528 = vld [vmem:[%s6 + $0xd8] sm:$0xff]
        %v529 = vld [vmem:[%s6 + $0xe0] sm:$0xff]
        %v530 = vld [vmem:[%s6 + $0xe8] sm:$0xff]
        %v531 = vld [vmem:[%s6 + $0xf0] sm:$0xff]
        %v532 = vld [vmem:[%s6 + $0xf8] sm:$0xff]
        %vm533 = vcmask 64512
        %v535 = vsel %vm533, %v429, 0
        %v538 = vsel %vm533, %v432, 0
        %v541 = vsel %vm533, %v478, 0
        %v544 = vsel %vm533, %v481, 0
        %546 = vmatpush.xpose.msra.mxu0 0.0
        %547 = vmatpush.xpose.msra.mxu0 0.0
        %548 = vmatpush.xpose.msra.mxu0 0.0
        %549 = vmatpush.xpose.msra.mxu0 0.0
        %550 = vmatpush.xpose.msra.mxu0 0.0
        %551 = vmatpush.xpose.msra.mxu0 0.0
        %552 = vmatpush.xpose.msra.mxu0 0.0
        %553 = vmatpush.xpose.msra.mxu0 0.0
        %554 = vmatpush.xpose.msra.mxu0 0.0
        %555 = vmatpush.xpose.msra.mxu0 0.0
        %556 = vmatpush.xpose.msra.mxu0 0.0
        %557 = vmatpush.xpose.msra.mxu0 0.0
        %558 = vmatpush.xpose.msra.mxu0 0.0
        %559 = vmatpush.xpose.msra.mxu0 0.0
        %560 = vmatpush.xpose.msra.mxu0 %v544
        %561 = vmatpush.xpose.msra.mxu0 %v541
        %562 = vmatmul.f32.gmra.mxu0 %v535
        %v563 = vpop.f32.mrf.mxu0
        %v564 = vadd.f32 0.0, %v563
        %565 = vmatmul.f32.gmra.mxu0 %v538
        %v566 = vpop.f32.mrf.mxu0
        %v567 = vadd.f32 0.0, %v566
        %568 = vdwg.mxu0
        %v570 = vsel %vm533, %v435, 0
        %v573 = vsel %vm533, %v438, 0
        %v576 = vsel %vm533, %v484, 0
        %v579 = vsel %vm533, %v487, 0
        %581 = vmatpush.xpose.msra.mxu0 0.0
        %582 = vmatpush.xpose.msra.mxu0 0.0
        %583 = vmatpush.xpose.msra.mxu0 0.0
        %584 = vmatpush.xpose.msra.mxu0 0.0
        %585 = vmatpush.xpose.msra.mxu0 0.0
        %586 = vmatpush.xpose.msra.mxu0 0.0
        %587 = vmatpush.xpose.msra.mxu0 0.0
        %588 = vmatpush.xpose.msra.mxu0 0.0
        %589 = vmatpush.xpose.msra.mxu0 0.0
        %590 = vmatpush.xpose.msra.mxu0 0.0
        %591 = vmatpush.xpose.msra.mxu0 0.0
        %592 = vmatpush.xpose.msra.mxu0 0.0
        %593 = vmatpush.xpose.msra.mxu0 0.0
        %594 = vmatpush.xpose.msra.mxu0 0.0
        %595 = vmatpush.xpose.msra.mxu0 %v579
        %596 = vmatpush.xpose.msra.mxu0 %v576
        %597 = vmatmul.f32.gmra.mxu0 %v570
        %v598 = vpop.f32.mrf.mxu0
        %v599 = vadd.f32 0.0, %v598
        %600 = vmatmul.f32.gmra.mxu0 %v573
        %v601 = vpop.f32.mrf.mxu0
        %v602 = vadd.f32 0.0, %v601
        %603 = vdwg.mxu0
        %v605 = vsel %vm533, %v441, 0
        %v608 = vsel %vm533, %v444, 0
        %v611 = vsel %vm533, %v490, 0
        %v614 = vsel %vm533, %v493, 0
        %616 = vmatpush.xpose.msra.mxu0 0.0
        %617 = vmatpush.xpose.msra.mxu0 0.0
        %618 = vmatpush.xpose.msra.mxu0 0.0
        %619 = vmatpush.xpose.msra.mxu0 0.0
        %620 = vmatpush.xpose.msra.mxu0 0.0
        %621 = vmatpush.xpose.msra.mxu0 0.0
        %622 = vmatpush.xpose.msra.mxu0 0.0
        %623 = vmatpush.xpose.msra.mxu0 0.0
        %624 = vmatpush.xpose.msra.mxu0 0.0
        %625 = vmatpush.xpose.msra.mxu0 0.0
        %626 = vmatpush.xpose.msra.mxu0 0.0
        %627 = vmatpush.xpose.msra.mxu0 0.0
        %628 = vmatpush.xpose.msra.mxu0 0.0
        %629 = vmatpush.xpose.msra.mxu0 0.0
        %630 = vmatpush.xpose.msra.mxu0 %v614
        %631 = vmatpush.xpose.msra.mxu0 %v611
        %632 = vmatmul.f32.gmra.mxu0 %v605
        %v633 = vpop.f32.mrf.mxu0
        %v634 = vadd.f32 0.0, %v633
        %635 = vmatmul.f32.gmra.mxu0 %v608
        %v636 = vpop.f32.mrf.mxu0
        %v637 = vadd.f32 0.0, %v636
        %638 = vdwg.mxu0
        %v640 = vsel %vm533, %v447, 0
        %v643 = vsel %vm533, %v450, 0
        %v646 = vsel %vm533, %v496, 0
        %v649 = vsel %vm533, %v499, 0
        %651 = vmatpush.xpose.msra.mxu0 0.0
        %652 = vmatpush.xpose.msra.mxu0 0.0
        %653 = vmatpush.xpose.msra.mxu0 0.0
        %654 = vmatpush.xpose.msra.mxu0 0.0
        %655 = vmatpush.xpose.msra.mxu0 0.0
        %656 = vmatpush.xpose.msra.mxu0 0.0
        %657 = vmatpush.xpose.msra.mxu0 0.0
        %658 = vmatpush.xpose.msra.mxu0 0.0
        %659 = vmatpush.xpose.msra.mxu0 0.0
        %660 = vmatpush.xpose.msra.mxu0 0.0
        %661 = vmatpush.xpose.msra.mxu0 0.0
        %662 = vmatpush.xpose.msra.mxu0 0.0
        %663 = vmatpush.xpose.msra.mxu0 0.0
        %664 = vmatpush.xpose.msra.mxu0 0.0
        %665 = vmatpush.xpose.msra.mxu0 %v649
        %666 = vmatpush.xpose.msra.mxu0 %v646
        %667 = vmatmul.f32.gmra.mxu0 %v640
        %v668 = vpop.f32.mrf.mxu0
        %v669 = vadd.f32 0.0, %v668
        %670 = vmatmul.f32.gmra.mxu0 %v643
        %v671 = vpop.f32.mrf.mxu0
        %v672 = vadd.f32 0.0, %v671
        %673 = vdwg.mxu0
        %v674 = vadd.f32 %v564, %v501
        %v675 = vadd.f32 %v567, %v502
        %v676 = vadd.f32 %v599, %v503
        %v677 = vadd.f32 %v602, %v504
        %v678 = vadd.f32 %v634, %v505
        %v679 = vadd.f32 %v637, %v506
        %v680 = vadd.f32 %v669, %v507
        %v681 = vadd.f32 %v672, %v508
        %vm682 = vcmask 130048
        %v683 = vsel %vm682, %v674, -inf
        %684 = vmax.xlane.f32.xlu0 %v683
        %v685 = vpop.xlane.xlu0 %684
        %v686 = vsel %vm682, %v675, -inf
        %687 = vmax.xlane.f32.xlu0 %v686
        %v688 = vpop.xlane.xlu0 %687
        %v689 = vsel %vm682, %v676, -inf
        %690 = vmax.xlane.f32.xlu0 %v689
        %v691 = vpop.xlane.xlu0 %690
        %v692 = vsel %vm682, %v677, -inf
        %693 = vmax.xlane.f32.xlu0 %v692
        %v694 = vpop.xlane.xlu0 %693
        %v695 = vsel %vm682, %v678, -inf
        %696 = vmax.xlane.f32.xlu0 %v695
        %v697 = vpop.xlane.xlu0 %696
        %v698 = vsel %vm682, %v679, -inf
        %699 = vmax.xlane.f32.xlu0 %v698
        %v700 = vpop.xlane.xlu0 %699
        %v701 = vsel %vm682, %v680, -inf
        %702 = vmax.xlane.f32.xlu0 %v701
        %v703 = vpop.xlane.xlu0 %702
        %v704 = vsel %vm682, %v681, -inf
        %705 = vmax.xlane.f32.xlu0 %v704
        %v706 = vpop.xlane.xlu0 %705
        %v707 = vsub.f32 %v674, %v685
        %v708 = vsub.f32 %v675, %v688
        %v709 = vsub.f32 %v676, %v691
        %v710 = vsub.f32 %v677, %v694
        %v711 = vsub.f32 %v678, %v697
        %v712 = vsub.f32 %v679, %v700
        %v713 = vsub.f32 %v680, %v703
        %v714 = vsub.f32 %v681, %v706
        %v715 = vmul.f32 %v707, 1.442695
        %v716 = vpow.pop %v715
        %v717 = vmul.f32 %v708, 1.442695
        %v718 = vpow.pop %v717
        %v719 = vmul.f32 %v709, 1.442695
        %v720 = vpow.pop %v719
        %v721 = vmul.f32 %v710, 1.442695
        %v722 = vpow.pop %v721
        %v723 = vmul.f32 %v711, 1.442695
        %v724 = vpow.pop %v723
        %v725 = vmul.f32 %v712, 1.442695
        %v726 = vpow.pop %v725
        %v727 = vmul.f32 %v713, 1.442695
        %v728 = vpow.pop %v727
        %v729 = vmul.f32 %v714, 1.442695
        %v730 = vpow.pop %v729
        %v731 = vsel %vm682, %v716, 0.0
        %732 = vadd.xlane.f32.xlu0 %v731
        %v733 = vpop.xlane.xlu0 %732
        %v734 = vsel %vm682, %v718, 0.0
        %735 = vadd.xlane.f32.xlu0 %v734
        %v736 = vpop.xlane.xlu0 %735
        %v737 = vsel %vm682, %v720, 0.0
        %738 = vadd.xlane.f32.xlu0 %v737
        %v739 = vpop.xlane.xlu0 %738
        %v740 = vsel %vm682, %v722, 0.0
        %741 = vadd.xlane.f32.xlu0 %v740
        %v742 = vpop.xlane.xlu0 %741
        %v743 = vsel %vm682, %v724, 0.0
        %744 = vadd.xlane.f32.xlu0 %v743
        %v745 = vpop.xlane.xlu0 %744
        %v746 = vsel %vm682, %v726, 0.0
        %747 = vadd.xlane.f32.xlu0 %v746
        %v748 = vpop.xlane.xlu0 %747
        %v749 = vsel %vm682, %v728, 0.0
        %750 = vadd.xlane.f32.xlu0 %v749
        %v751 = vpop.xlane.xlu0 %750
        %v752 = vsel %vm682, %v730, 0.0
        %753 = vadd.xlane.f32.xlu0 %v752
        %v754 = vpop.xlane.xlu0 %753
        %v755 = vrcp.pop %v733
        %v756 = vmul.f32 %v733, %v755
        %v757 = vsub.f32 1.0, %v756
        %v758 = vmul.f32 %v755, %v757
        %v759 = vadd.f32 %v755, %v758
        %vm760 = vweird.f32 %v733
        %vm761 = vweird.f32 %v755
        %vm762 = vmor %vm760, %vm761
        %v763 = vsel %vm762, %v755, %v759
        %v764 = vand.u32 2147483647, %v733
        %vm765 = vcmp.eq.f32.partialorder %v764, 8.507059e+37
        %v766 = vand.u32 %v733, 2147483648
        %v767 = vor.u32 1.1754944e-38, %v766
        %v768 = vsel %vm765, %v767, %v763
        %v769 = vmul.f32 1.0, %v768
        %v770 = vrcp.pop %v736
        %v771 = vmul.f32 %v736, %v770
        %v772 = vsub.f32 1.0, %v771
        %v773 = vmul.f32 %v770, %v772
        %v774 = vadd.f32 %v770, %v773
        %vm775 = vweird.f32 %v736
        %vm776 = vweird.f32 %v770
        %vm777 = vmor %vm775, %vm776
        %v778 = vsel %vm777, %v770, %v774
        %v779 = vand.u32 2147483647, %v736
        %vm780 = vcmp.eq.f32.partialorder %v779, 8.507059e+37
        %v781 = vand.u32 %v736, 2147483648
        %v782 = vor.u32 1.1754944e-38, %v781
        %v783 = vsel %vm780, %v782, %v778
        %v784 = vmul.f32 1.0, %v783
        %v785 = vrcp.pop %v739
        %v786 = vmul.f32 %v739, %v785
        %v787 = vsub.f32 1.0, %v786
        %v788 = vmul.f32 %v785, %v787
        %v789 = vadd.f32 %v785, %v788
        %vm790 = vweird.f32 %v739
        %vm791 = vweird.f32 %v785
        %vm792 = vmor %vm790, %vm791
        %v793 = vsel %vm792, %v785, %v789
        %v794 = vand.u32 2147483647, %v739
        %vm795 = vcmp.eq.f32.partialorder %v794, 8.507059e+37
        %v796 = vand.u32 %v739, 2147483648
        %v797 = vor.u32 1.1754944e-38, %v796
        %v798 = vsel %vm795, %v797, %v793
        %v799 = vmul.f32 1.0, %v798
        %v800 = vrcp.pop %v742
        %v801 = vmul.f32 %v742, %v800
        %v802 = vsub.f32 1.0, %v801
        %v803 = vmul.f32 %v800, %v802
        %v804 = vadd.f32 %v800, %v803
        %vm805 = vweird.f32 %v742
        %vm806 = vweird.f32 %v800
        %vm807 = vmor %vm805, %vm806
        %v808 = vsel %vm807, %v800, %v804
        %v809 = vand.u32 2147483647, %v742
        %vm810 = vcmp.eq.f32.partialorder %v809, 8.507059e+37
        %v811 = vand.u32 %v742, 2147483648
        %v812 = vor.u32 1.1754944e-38, %v811
        %v813 = vsel %vm810, %v812, %v808
        %v814 = vmul.f32 1.0, %v813
        %v815 = vrcp.pop %v745
        %v816 = vmul.f32 %v745, %v815
        %v817 = vsub.f32 1.0, %v816
        %v818 = vmul.f32 %v815, %v817
        %v819 = vadd.f32 %v815, %v818
        %vm820 = vweird.f32 %v745
        %vm821 = vweird.f32 %v815
        %vm822 = vmor %vm820, %vm821
        %v823 = vsel %vm822, %v815, %v819
        %v824 = vand.u32 2147483647, %v745
        %vm825 = vcmp.eq.f32.partialorder %v824, 8.507059e+37
        %v826 = vand.u32 %v745, 2147483648
        %v827 = vor.u32 1.1754944e-38, %v826
        %v828 = vsel %vm825, %v827, %v823
        %v829 = vmul.f32 1.0, %v828
        %v830 = vrcp.pop %v748
        %v831 = vmul.f32 %v748, %v830
        %v832 = vsub.f32 1.0, %v831
        %v833 = vmul.f32 %v830, %v832
        %v834 = vadd.f32 %v830, %v833
        %vm835 = vweird.f32 %v748
        %vm836 = vweird.f32 %v830
        %vm837 = vmor %vm835, %vm836
        %v838 = vsel %vm837, %v830, %v834
        %v839 = vand.u32 2147483647, %v748
        %vm840 = vcmp.eq.f32.partialorder %v839, 8.507059e+37
        %v841 = vand.u32 %v748, 2147483648
        %v842 = vor.u32 1.1754944e-38, %v841
        %v843 = vsel %vm840, %v842, %v838
        %v844 = vmul.f32 1.0, %v843
        %v845 = vrcp.pop %v751
        %v846 = vmul.f32 %v751, %v845
        %v847 = vsub.f32 1.0, %v846
        %v848 = vmul.f32 %v845, %v847
        %v849 = vadd.f32 %v845, %v848
        %vm850 = vweird.f32 %v751
        %vm851 = vweird.f32 %v845
        %vm852 = vmor %vm850, %vm851
        %v853 = vsel %vm852, %v845, %v849
        %v854 = vand.u32 2147483647, %v751
        %vm855 = vcmp.eq.f32.partialorder %v854, 8.507059e+37
        %v856 = vand.u32 %v751, 2147483648
        %v857 = vor.u32 1.1754944e-38, %v856
        %v858 = vsel %vm855, %v857, %v853
        %v859 = vmul.f32 1.0, %v858
        %v860 = vrcp.pop %v754
        %v861 = vmul.f32 %v754, %v860
        %v862 = vsub.f32 1.0, %v861
        %v863 = vmul.f32 %v860, %v862
        %v864 = vadd.f32 %v860, %v863
        %vm865 = vweird.f32 %v754
        %vm866 = vweird.f32 %v860
        %vm867 = vmor %vm865, %vm866
        %v868 = vsel %vm867, %v860, %v864
        %v869 = vand.u32 2147483647, %v754
        %vm870 = vcmp.eq.f32.partialorder %v869, 8.507059e+37
        %v871 = vand.u32 %v754, 2147483648
        %v872 = vor.u32 1.1754944e-38, %v871
        %v873 = vsel %vm870, %v872, %v868
        %v874 = vmul.f32 1.0, %v873
        %v875 = vmul.f32 %v716, %v769
        %v876 = vmul.f32 %v718, %v784
        %v877 = vmul.f32 %v720, %v799
        %v878 = vmul.f32 %v722, %v814
        %v879 = vmul.f32 %v724, %v829
        %v880 = vmul.f32 %v726, %v844
        %v881 = vmul.f32 %v728, %v859
        %v882 = vmul.f32 %v730, %v874
        %v884 = vsel %vm682, %v875, 0
        %v887 = vsel %vm682, %v876, 0
        %889 = vmatpush.msra.mxu0 0.0
        %890 = vmatpush.msra.mxu0 0.0
        %891 = vmatpush.msra.mxu0 0.0
        %892 = vmatpush.msra.mxu0 0.0
        %893 = vmatpush.msra.mxu0 0.0
        %894 = vmatpush.msra.mxu0 0.0
        %895 = vmatpush.msra.mxu0 0.0
        %896 = vmatpush.msra.mxu0 0.0
        %897 = vmatpush.msra.mxu0 0.0
        %898 = vmatpush.msra.mxu0 0.0
        %899 = vmatpush.msra.mxu0 0.0
        %900 = vmatpush.msra.mxu0 0.0
        %901 = vmatpush.msra.mxu0 0.0
        %902 = vmatpush.msra.mxu0 0.0
        %903 = vmatpush.msra.mxu0 %v371
        %904 = vmatpush.msra.mxu0 %v370
        %905 = vmatmul.f32.gmra.mxu0 %v884
        %v906 = vpop.f32.mrf.mxu0
        %v907 = vadd.f32 0.0, %v906
        %908 = vmatmul.f32.gmra.mxu0 %v887
        %v909 = vpop.f32.mrf.mxu0
        %v910 = vadd.f32 0.0, %v909
        %911 = vdwg.mxu0
        %v913 = vsel %vm682, %v877, 0
        %v916 = vsel %vm682, %v878, 0
        %918 = vmatpush.msra.mxu0 0.0
        %919 = vmatpush.msra.mxu0 0.0
        %920 = vmatpush.msra.mxu0 0.0
        %921 = vmatpush.msra.mxu0 0.0
        %922 = vmatpush.msra.mxu0 0.0
        %923 = vmatpush.msra.mxu0 0.0
        %924 = vmatpush.msra.mxu0 0.0
        %925 = vmatpush.msra.mxu0 0.0
        %926 = vmatpush.msra.mxu0 0.0
        %927 = vmatpush.msra.mxu0 0.0
        %928 = vmatpush.msra.mxu0 0.0
        %929 = vmatpush.msra.mxu0 0.0
        %930 = vmatpush.msra.mxu0 0.0
        %931 = vmatpush.msra.mxu0 0.0
        %932 = vmatpush.msra.mxu0 %v373
        %933 = vmatpush.msra.mxu0 %v372
        %934 = vmatmul.f32.gmra.mxu0 %v913
        %v935 = vpop.f32.mrf.mxu0
        %v936 = vadd.f32 0.0, %v935
        %937 = vmatmul.f32.gmra.mxu0 %v916
        %v938 = vpop.f32.mrf.mxu0
        %v939 = vadd.f32 0.0, %v938
        %940 = vdwg.mxu0
        %v942 = vsel %vm682, %v879, 0
        %v945 = vsel %vm682, %v880, 0
        %947 = vmatpush.msra.mxu0 0.0
        %948 = vmatpush.msra.mxu0 0.0
        %949 = vmatpush.msra.mxu0 0.0
        %950 = vmatpush.msra.mxu0 0.0
        %951 = vmatpush.msra.mxu0 0.0
        %952 = vmatpush.msra.mxu0 0.0
        %953 = vmatpush.msra.mxu0 0.0
        %954 = vmatpush.msra.mxu0 0.0
        %955 = vmatpush.msra.mxu0 0.0
        %956 = vmatpush.msra.mxu0 0.0
        %957 = vmatpush.msra.mxu0 0.0
        %958 = vmatpush.msra.mxu0 0.0
        %959 = vmatpush.msra.mxu0 0.0
        %960 = vmatpush.msra.mxu0 0.0
        %961 = vmatpush.msra.mxu0 %v375
        %962 = vmatpush.msra.mxu0 %v374
        %963 = vmatmul.f32.gmra.mxu0 %v942
        %v964 = vpop.f32.mrf.mxu0
        %v965 = vadd.f32 0.0, %v964
        %966 = vmatmul.f32.gmra.mxu0 %v945
        %v967 = vpop.f32.mrf.mxu0
        %v968 = vadd.f32 0.0, %v967
        %969 = vdwg.mxu0
        %v971 = vsel %vm682, %v881, 0
        %v974 = vsel %vm682, %v882, 0
        %976 = vmatpush.msra.mxu0 0.0
        %977 = vmatpush.msra.mxu0 0.0
        %978 = vmatpush.msra.mxu0 0.0
        %979 = vmatpush.msra.mxu0 0.0
        %980 = vmatpush.msra.mxu0 0.0
        %981 = vmatpush.msra.mxu0 0.0
        %982 = vmatpush.msra.mxu0 0.0
        %983 = vmatpush.msra.mxu0 0.0
        %984 = vmatpush.msra.mxu0 0.0
        %985 = vmatpush.msra.mxu0 0.0
        %986 = vmatpush.msra.mxu0 0.0
        %987 = vmatpush.msra.mxu0 0.0
        %988 = vmatpush.msra.mxu0 0.0
        %989 = vmatpush.msra.mxu0 0.0
        %990 = vmatpush.msra.mxu0 %v377
        %991 = vmatpush.msra.mxu0 %v376
        %992 = vmatmul.f32.gmra.mxu0 %v971
        %v993 = vpop.f32.mrf.mxu0
        %v994 = vadd.f32 0.0, %v993
        %995 = vmatmul.f32.gmra.mxu0 %v974
        %v996 = vpop.f32.mrf.mxu0
        %v997 = vadd.f32 0.0, %v996
        %998 = vdwg.mxu0
        %999 = vst.msk [vmem:[#allocation2] sm:$0xff] %vm533, %v907
        %1000 = vst.msk [vmem:[#allocation2 + $0x8] sm:$0xff] %vm533, %v910
        %1001 = vst.msk [vmem:[#allocation2 + $0x10] sm:$0xff] %vm533, %v936
        %1002 = vst.msk [vmem:[#allocation2 + $0x18] sm:$0xff] %vm533, %v939
        %1003 = vst.msk [vmem:[#allocation2 + $0x20] sm:$0xff] %vm533, %v965
        %1004 = vst.msk [vmem:[#allocation2 + $0x28] sm:$0xff] %vm533, %v968
        %1005 = vst.msk [vmem:[#allocation2 + $0x30] sm:$0xff] %vm533, %v994
        %1006 = vst.msk [vmem:[#allocation2 + $0x38] sm:$0xff] %vm533, %v997
        %1007 = vrot.lane.b32.xlu0 %v429, 120
        %v1008 = vpop.permute.xlu0 %1007
        %1009 = vrot.lane.b32.xlu0 %v432, 120
        %v1010 = vpop.permute.xlu0 %1009
        %1011 = vrot.lane.b32.xlu0 %v478, 120
        %v1012 = vpop.permute.xlu0 %1011
        %1013 = vrot.lane.b32.xlu0 %v481, 120
        %v1014 = vpop.permute.xlu0 %1013
        %v1015 = vsel %vm533, %v1008, 0
        %v1017 = vsel %vm533, %v1010, 0
        %v1019 = vsel %vm533, %v1012, 0
        %v1021 = vsel %vm533, %v1014, 0
        %1023 = vmatpush.xpose.msra.mxu0 0.0
        %1024 = vmatpush.xpose.msra.mxu0 0.0
        %1025 = vmatpush.xpose.msra.mxu0 0.0
        %1026 = vmatpush.xpose.msra.mxu0 0.0
        %1027 = vmatpush.xpose.msra.mxu0 0.0
        %1028 = vmatpush.xpose.msra.mxu0 0.0
        %1029 = vmatpush.xpose.msra.mxu0 0.0
        %1030 = vmatpush.xpose.msra.mxu0 0.0
        %1031 = vmatpush.xpose.msra.mxu0 0.0
        %1032 = vmatpush.xpose.msra.mxu0 0.0
        %1033 = vmatpush.xpose.msra.mxu0 0.0
        %1034 = vmatpush.xpose.msra.mxu0 0.0
        %1035 = vmatpush.xpose.msra.mxu0 0.0
        %1036 = vmatpush.xpose.msra.mxu0 0.0
        %1037 = vmatpush.xpose.msra.mxu0 %v1021
        %1038 = vmatpush.xpose.msra.mxu0 %v1019
        %1039 = vmatmul.f32.gmra.mxu0 %v1015
        %v1040 = vpop.f32.mrf.mxu0
        %v1041 = vadd.f32 0.0, %v1040
        %1042 = vmatmul.f32.gmra.mxu0 %v1017
        %v1043 = vpop.f32.mrf.mxu0
        %v1044 = vadd.f32 0.0, %v1043
        %1045 = vdwg.mxu0
        %1046 = vrot.lane.b32.xlu0 %v435, 120
        %v1047 = vpop.permute.xlu0 %1046
        %1048 = vrot.lane.b32.xlu0 %v438, 120
        %v1049 = vpop.permute.xlu0 %1048
        %1050 = vrot.lane.b32.xlu0 %v484, 120
        %v1051 = vpop.permute.xlu0 %1050
        %1052 = vrot.lane.b32.xlu0 %v487, 120
        %v1053 = vpop.permute.xlu0 %1052
        %v1054 = vsel %vm533, %v1047, 0
        %v1056 = vsel %vm533, %v1049, 0
        %v1058 = vsel %vm533, %v1051, 0
        %v1060 = vsel %vm533, %v1053, 0
        %1062 = vmatpush.xpose.msra.mxu0 0.0
        %1063 = vmatpush.xpose.msra.mxu0 0.0
        %1064 = vmatpush.xpose.msra.mxu0 0.0
        %1065 = vmatpush.xpose.msra.mxu0 0.0
        %1066 = vmatpush.xpose.msra.mxu0 0.0
        %1067 = vmatpush.xpose.msra.mxu0 0.0
        %1068 = vmatpush.xpose.msra.mxu0 0.0
        %1069 = vmatpush.xpose.msra.mxu0 0.0
        %1070 = vmatpush.xpose.msra.mxu0 0.0
        %1071 = vmatpush.xpose.msra.mxu0 0.0
        %1072 = vmatpush.xpose.msra.mxu0 0.0
        %1073 = vmatpush.xpose.msra.mxu0 0.0
        %1074 = vmatpush.xpose.msra.mxu0 0.0
        %1075 = vmatpush.xpose.msra.mxu0 0.0
        %1076 = vmatpush.xpose.msra.mxu0 %v1060
        %1077 = vmatpush.xpose.msra.mxu0 %v1058
        %1078 = vmatmul.f32.gmra.mxu0 %v1054
        %v1079 = vpop.f32.mrf.mxu0
        %v1080 = vadd.f32 0.0, %v1079
        %1081 = vmatmul.f32.gmra.mxu0 %v1056
        %v1082 = vpop.f32.mrf.mxu0
        %v1083 = vadd.f32 0.0, %v1082
        %1084 = vdwg.mxu0
        %1085 = vrot.lane.b32.xlu0 %v441, 120
        %v1086 = vpop.permute.xlu0 %1085
        %1087 = vrot.lane.b32.xlu0 %v444, 120
        %v1088 = vpop.permute.xlu0 %1087
        %1089 = vrot.lane.b32.xlu0 %v490, 120
        %v1090 = vpop.permute.xlu0 %1089
        %1091 = vrot.lane.b32.xlu0 %v493, 120
        %v1092 = vpop.permute.xlu0 %1091
        %v1093 = vsel %vm533, %v1086, 0
        %v1095 = vsel %vm533, %v1088, 0
        %v1097 = vsel %vm533, %v1090, 0
        %v1099 = vsel %vm533, %v1092, 0
        %1101 = vmatpush.xpose.msra.mxu0 0.0
        %1102 = vmatpush.xpose.msra.mxu0 0.0
        %1103 = vmatpush.xpose.msra.mxu0 0.0
        %1104 = vmatpush.xpose.msra.mxu0 0.0
        %1105 = vmatpush.xpose.msra.mxu0 0.0
        %1106 = vmatpush.xpose.msra.mxu0 0.0
        %1107 = vmatpush.xpose.msra.mxu0 0.0
        %1108 = vmatpush.xpose.msra.mxu0 0.0
        %1109 = vmatpush.xpose.msra.mxu0 0.0
        %1110 = vmatpush.xpose.msra.mxu0 0.0
        %1111 = vmatpush.xpose.msra.mxu0 0.0
        %1112 = vmatpush.xpose.msra.mxu0 0.0
        %1113 = vmatpush.xpose.msra.mxu0 0.0
        %1114 = vmatpush.xpose.msra.mxu0 0.0
        %1115 = vmatpush.xpose.msra.mxu0 %v1099
        %1116 = vmatpush.xpose.msra.mxu0 %v1097
        %1117 = vmatmul.f32.gmra.mxu0 %v1093
        %v1118 = vpop.f32.mrf.mxu0
        %v1119 = vadd.f32 0.0, %v1118
        %1120 = vmatmul.f32.gmra.mxu0 %v1095
        %v1121 = vpop.f32.mrf.mxu0
        %v1122 = vadd.f32 0.0, %v1121
        %1123 = vdwg.mxu0
        %1124 = vrot.lane.b32.xlu0 %v447, 120
        %v1125 = vpop.permute.xlu0 %1124
        %1126 = vrot.lane.b32.xlu0 %v450, 120
        %v1127 = vpop.permute.xlu0 %1126
        %1128 = vrot.lane.b32.xlu0 %v496, 120
        %v1129 = vpop.permute.xlu0 %1128
        %1130 = vrot.lane.b32.xlu0 %v499, 120
        %v1131 = vpop.permute.xlu0 %1130
        %v1132 = vsel %vm533, %v1125, 0
        %v1134 = vsel %vm533, %v1127, 0
        %v1136 = vsel %vm533, %v1129, 0
        %v1138 = vsel %vm533, %v1131, 0
        %1140 = vmatpush.xpose.msra.mxu0 0.0
        %1141 = vmatpush.xpose.msra.mxu0 0.0
        %1142 = vmatpush.xpose.msra.mxu0 0.0
        %1143 = vmatpush.xpose.msra.mxu0 0.0
        %1144 = vmatpush.xpose.msra.mxu0 0.0
        %1145 = vmatpush.xpose.msra.mxu0 0.0
        %1146 = vmatpush.xpose.msra.mxu0 0.0
        %1147 = vmatpush.xpose.msra.mxu0 0.0
        %1148 = vmatpush.xpose.msra.mxu0 0.0
        %1149 = vmatpush.xpose.msra.mxu0 0.0
        %1150 = vmatpush.xpose.msra.mxu0 0.0
        %1151 = vmatpush.xpose.msra.mxu0 0.0
        %1152 = vmatpush.xpose.msra.mxu0 0.0
        %1153 = vmatpush.xpose.msra.mxu0 0.0
        %1154 = vmatpush.xpose.msra.mxu0 %v1138
        %1155 = vmatpush.xpose.msra.mxu0 %v1136
        %1156 = vmatmul.f32.gmra.mxu0 %v1132
        %v1157 = vpop.f32.mrf.mxu0
        %v1158 = vadd.f32 0.0, %v1157
        %1159 = vmatmul.f32.gmra.mxu0 %v1134
        %v1160 = vpop.f32.mrf.mxu0
        %v1161 = vadd.f32 0.0, %v1160
        %1162 = vdwg.mxu0
        %v1163 = vadd.f32 %v1041, %v509
        %v1164 = vadd.f32 %v1044, %v510
        %v1165 = vadd.f32 %v1080, %v511
        %v1166 = vadd.f32 %v1083, %v512
        %v1167 = vadd.f32 %v1119, %v513
        %v1168 = vadd.f32 %v1122, %v514
        %v1169 = vadd.f32 %v1158, %v515
        %v1170 = vadd.f32 %v1161, %v516
        %v1171 = vsel %vm682, %v1163, -inf
        %1172 = vmax.xlane.f32.xlu0 %v1171
        %v1173 = vpop.xlane.xlu0 %1172
        %v1174 = vsel %vm682, %v1164, -inf
        %1175 = vmax.xlane.f32.xlu0 %v1174
        %v1176 = vpop.xlane.xlu0 %1175
        %v1177 = vsel %vm682, %v1165, -inf
        %1178 = vmax.xlane.f32.xlu0 %v1177
        %v1179 = vpop.xlane.xlu0 %1178
        %v1180 = vsel %vm682, %v1166, -inf
        %1181 = vmax.xlane.f32.xlu0 %v1180
        %v1182 = vpop.xlane.xlu0 %1181
        %v1183 = vsel %vm682, %v1167, -inf
        %1184 = vmax.xlane.f32.xlu0 %v1183
        %v1185 = vpop.xlane.xlu0 %1184
        %v1186 = vsel %vm682, %v1168, -inf
        %1187 = vmax.xlane.f32.xlu0 %v1186
        %v1188 = vpop.xlane.xlu0 %1187
        %v1189 = vsel %vm682, %v1169, -inf
        %1190 = vmax.xlane.f32.xlu0 %v1189
        %v1191 = vpop.xlane.xlu0 %1190
        %v1192 = vsel %vm682, %v1170, -inf
        %1193 = vmax.xlane.f32.xlu0 %v1192
        %v1194 = vpop.xlane.xlu0 %1193
        %v1195 = vsub.f32 %v1163, %v1173
        %v1196 = vsub.f32 %v1164, %v1176
        %v1197 = vsub.f32 %v1165, %v1179
        %v1198 = vsub.f32 %v1166, %v1182
        %v1199 = vsub.f32 %v1167, %v1185
        %v1200 = vsub.f32 %v1168, %v1188
        %v1201 = vsub.f32 %v1169, %v1191
        %v1202 = vsub.f32 %v1170, %v1194
        %v1203 = vmul.f32 %v1195, 1.442695
        %v1204 = vpow.pop %v1203
        %v1205 = vmul.f32 %v1196, 1.442695
        %v1206 = vpow.pop %v1205
        %v1207 = vmul.f32 %v1197, 1.442695
        %v1208 = vpow.pop %v1207
        %v1209 = vmul.f32 %v1198, 1.442695
        %v1210 = vpow.pop %v1209
        %v1211 = vmul.f32 %v1199, 1.442695
        %v1212 = vpow.pop %v1211
        %v1213 = vmul.f32 %v1200, 1.442695
        %v1214 = vpow.pop %v1213
        %v1215 = vmul.f32 %v1201, 1.442695
        %v1216 = vpow.pop %v1215
        %v1217 = vmul.f32 %v1202, 1.442695
        %v1218 = vpow.pop %v1217
        %v1219 = vsel %vm682, %v1204, 0.0
        %1220 = vadd.xlane.f32.xlu0 %v1219
        %v1221 = vpop.xlane.xlu0 %1220
        %v1222 = vsel %vm682, %v1206, 0.0
        %1223 = vadd.xlane.f32.xlu0 %v1222
        %v1224 = vpop.xlane.xlu0 %1223
        %v1225 = vsel %vm682, %v1208, 0.0
        %1226 = vadd.xlane.f32.xlu0 %v1225
        %v1227 = vpop.xlane.xlu0 %1226
        %v1228 = vsel %vm682, %v1210, 0.0
        %1229 = vadd.xlane.f32.xlu0 %v1228
        %v1230 = vpop.xlane.xlu0 %1229
        %v1231 = vsel %vm682, %v1212, 0.0
        %1232 = vadd.xlane.f32.xlu0 %v1231
        %v1233 = vpop.xlane.xlu0 %1232
        %v1234 = vsel %vm682, %v1214, 0.0
        %1235 = vadd.xlane.f32.xlu0 %v1234
        %v1236 = vpop.xlane.xlu0 %1235
        %v1237 = vsel %vm682, %v1216, 0.0
        %1238 = vadd.xlane.f32.xlu0 %v1237
        %v1239 = vpop.xlane.xlu0 %1238
        %v1240 = vsel %vm682, %v1218, 0.0
        %1241 = vadd.xlane.f32.xlu0 %v1240
        %v1242 = vpop.xlane.xlu0 %1241
        %v1243 = vrcp.pop %v1221
        %v1244 = vmul.f32 %v1221, %v1243
        %v1245 = vsub.f32 1.0, %v1244
        %v1246 = vmul.f32 %v1243, %v1245
        %v1247 = vadd.f32 %v1243, %v1246
        %vm1248 = vweird.f32 %v1221
        %vm1249 = vweird.f32 %v1243
        %vm1250 = vmor %vm1248, %vm1249
        %v1251 = vsel %vm1250, %v1243, %v1247
        %v1252 = vand.u32 2147483647, %v1221
        %vm1253 = vcmp.eq.f32.partialorder %v1252, 8.507059e+37
        %v1254 = vand.u32 %v1221, 2147483648
        %v1255 = vor.u32 1.1754944e-38, %v1254
        %v1256 = vsel %vm1253, %v1255, %v1251
        %v1257 = vmul.f32 1.0, %v1256
        %v1258 = vrcp.pop %v1224
        %v1259 = vmul.f32 %v1224, %v1258
        %v1260 = vsub.f32 1.0, %v1259
        %v1261 = vmul.f32 %v1258, %v1260
        %v1262 = vadd.f32 %v1258, %v1261
        %vm1263 = vweird.f32 %v1224
        %vm1264 = vweird.f32 %v1258
        %vm1265 = vmor %vm1263, %vm1264
        %v1266 = vsel %vm1265, %v1258, %v1262
        %v1267 = vand.u32 2147483647, %v1224
        %vm1268 = vcmp.eq.f32.partialorder %v1267, 8.507059e+37
        %v1269 = vand.u32 %v1224, 2147483648
        %v1270 = vor.u32 1.1754944e-38, %v1269
        %v1271 = vsel %vm1268, %v1270, %v1266
        %v1272 = vmul.f32 1.0, %v1271
        %v1273 = vrcp.pop %v1227
        %v1274 = vmul.f32 %v1227, %v1273
        %v1275 = vsub.f32 1.0, %v1274
        %v1276 = vmul.f32 %v1273, %v1275
        %v1277 = vadd.f32 %v1273, %v1276
        %vm1278 = vweird.f32 %v1227
        %vm1279 = vweird.f32 %v1273
        %vm1280 = vmor %vm1278, %vm1279
        %v1281 = vsel %vm1280, %v1273, %v1277
        %v1282 = vand.u32 2147483647, %v1227
        %vm1283 = vcmp.eq.f32.partialorder %v1282, 8.507059e+37
        %v1284 = vand.u32 %v1227, 2147483648
        %v1285 = vor.u32 1.1754944e-38, %v1284
        %v1286 = vsel %vm1283, %v1285, %v1281
        %v1287 = vmul.f32 1.0, %v1286
        %v1288 = vrcp.pop %v1230
        %v1289 = vmul.f32 %v1230, %v1288
        %v1290 = vsub.f32 1.0, %v1289
        %v1291 = vmul.f32 %v1288, %v1290
        %v1292 = vadd.f32 %v1288, %v1291
        %vm1293 = vweird.f32 %v1230
        %vm1294 = vweird.f32 %v1288
        %vm1295 = vmor %vm1293, %vm1294
        %v1296 = vsel %vm1295, %v1288, %v1292
        %v1297 = vand.u32 2147483647, %v1230
        %vm1298 = vcmp.eq.f32.partialorder %v1297, 8.507059e+37
        %v1299 = vand.u32 %v1230, 2147483648
        %v1300 = vor.u32 1.1754944e-38, %v1299
        %v1301 = vsel %vm1298, %v1300, %v1296
        %v1302 = vmul.f32 1.0, %v1301
        %v1303 = vrcp.pop %v1233
        %v1304 = vmul.f32 %v1233, %v1303
        %v1305 = vsub.f32 1.0, %v1304
        %v1306 = vmul.f32 %v1303, %v1305
        %v1307 = vadd.f32 %v1303, %v1306
        %vm1308 = vweird.f32 %v1233
        %vm1309 = vweird.f32 %v1303
        %vm1310 = vmor %vm1308, %vm1309
        %v1311 = vsel %vm1310, %v1303, %v1307
        %v1312 = vand.u32 2147483647, %v1233
        %vm1313 = vcmp.eq.f32.partialorder %v1312, 8.507059e+37
        %v1314 = vand.u32 %v1233, 2147483648
        %v1315 = vor.u32 1.1754944e-38, %v1314
        %v1316 = vsel %vm1313, %v1315, %v1311
        %v1317 = vmul.f32 1.0, %v1316
        %v1318 = vrcp.pop %v1236
        %v1319 = vmul.f32 %v1236, %v1318
        %v1320 = vsub.f32 1.0, %v1319
        %v1321 = vmul.f32 %v1318, %v1320
        %v1322 = vadd.f32 %v1318, %v1321
        %vm1323 = vweird.f32 %v1236
        %vm1324 = vweird.f32 %v1318
        %vm1325 = vmor %vm1323, %vm1324
        %v1326 = vsel %vm1325, %v1318, %v1322
        %v1327 = vand.u32 2147483647, %v1236
        %vm1328 = vcmp.eq.f32.partialorder %v1327, 8.507059e+37
        %v1329 = vand.u32 %v1236, 2147483648
        %v1330 = vor.u32 1.1754944e-38, %v1329
        %v1331 = vsel %vm1328, %v1330, %v1326
        %v1332 = vmul.f32 1.0, %v1331
        %v1333 = vrcp.pop %v1239
        %v1334 = vmul.f32 %v1239, %v1333
        %v1335 = vsub.f32 1.0, %v1334
        %v1336 = vmul.f32 %v1333, %v1335
        %v1337 = vadd.f32 %v1333, %v1336
        %vm1338 = vweird.f32 %v1239
        %vm1339 = vweird.f32 %v1333
        %vm1340 = vmor %vm1338, %vm1339
        %v1341 = vsel %vm1340, %v1333, %v1337
        %v1342 = vand.u32 2147483647, %v1239
        %vm1343 = vcmp.eq.f32.partialorder %v1342, 8.507059e+37
        %v1344 = vand.u32 %v1239, 2147483648
        %v1345 = vor.u32 1.1754944e-38, %v1344
        %v1346 = vsel %vm1343, %v1345, %v1341
        %v1347 = vmul.f32 1.0, %v1346
        %v1348 = vrcp.pop %v1242
        %v1349 = vmul.f32 %v1242, %v1348
        %v1350 = vsub.f32 1.0, %v1349
        %v1351 = vmul.f32 %v1348, %v1350
        %v1352 = vadd.f32 %v1348, %v1351
        %vm1353 = vweird.f32 %v1242
        %vm1354 = vweird.f32 %v1348
        %vm1355 = vmor %vm1353, %vm1354
        %v1356 = vsel %vm1355, %v1348, %v1352
        %v1357 = vand.u32 2147483647, %v1242
        %vm1358 = vcmp.eq.f32.partialorder %v1357, 8.507059e+37
        %v1359 = vand.u32 %v1242, 2147483648
        %v1360 = vor.u32 1.1754944e-38, %v1359
        %v1361 = vsel %vm1358, %v1360, %v1356
        %v1362 = vmul.f32 1.0, %v1361
        %v1363 = vmul.f32 %v1204, %v1257
        %v1364 = vmul.f32 %v1206, %v1272
        %v1365 = vmul.f32 %v1208, %v1287
        %v1366 = vmul.f32 %v1210, %v1302
        %v1367 = vmul.f32 %v1212, %v1317
        %v1368 = vmul.f32 %v1214, %v1332
        %v1369 = vmul.f32 %v1216, %v1347
        %v1370 = vmul.f32 %v1218, %v1362
        %1373 = vrot.lane.b32.xlu0 %v370, 120
        %v1374 = vpop.permute.xlu0 %1373
        %1375 = vrot.lane.b32.xlu0 %v371, 120
        %v1376 = vpop.permute.xlu0 %1375
        %v1380 = vsel %vm682, %v1363, 0
        %v1383 = vsel %vm682, %v1364, 0
        %1385 = vmatpush.msra.mxu0 0.0
        %1386 = vmatpush.msra.mxu0 0.0
        %1387 = vmatpush.msra.mxu0 0.0
        %1388 = vmatpush.msra.mxu0 0.0
        %1389 = vmatpush.msra.mxu0 0.0
        %1390 = vmatpush.msra.mxu0 0.0
        %1391 = vmatpush.msra.mxu0 0.0
        %1392 = vmatpush.msra.mxu0 0.0
        %1393 = vmatpush.msra.mxu0 0.0
        %1394 = vmatpush.msra.mxu0 0.0
        %1395 = vmatpush.msra.mxu0 0.0
        %1396 = vmatpush.msra.mxu0 0.0
        %1397 = vmatpush.msra.mxu0 0.0
        %1398 = vmatpush.msra.mxu0 0.0
        %1399 = vmatpush.msra.mxu0 %v1376
        %1400 = vmatpush.msra.mxu0 %v1374
        %1401 = vmatmul.f32.gmra.mxu0 %v1380
        %v1402 = vpop.f32.mrf.mxu0
        %v1403 = vadd.f32 0.0, %v1402
        %1404 = vmatmul.f32.gmra.mxu0 %v1383
        %v1405 = vpop.f32.mrf.mxu0
        %v1406 = vadd.f32 0.0, %v1405
        %1407 = vdwg.mxu0
        %1410 = vrot.lane.b32.xlu0 %v372, 120
        %v1411 = vpop.permute.xlu0 %1410
        %1412 = vrot.lane.b32.xlu0 %v373, 120
        %v1413 = vpop.permute.xlu0 %1412
        %v1417 = vsel %vm682, %v1365, 0
        %v1420 = vsel %vm682, %v1366, 0
        %1422 = vmatpush.msra.mxu0 0.0
        %1423 = vmatpush.msra.mxu0 0.0
        %1424 = vmatpush.msra.mxu0 0.0
        %1425 = vmatpush.msra.mxu0 0.0
        %1426 = vmatpush.msra.mxu0 0.0
        %1427 = vmatpush.msra.mxu0 0.0
        %1428 = vmatpush.msra.mxu0 0.0
        %1429 = vmatpush.msra.mxu0 0.0
        %1430 = vmatpush.msra.mxu0 0.0
        %1431 = vmatpush.msra.mxu0 0.0
        %1432 = vmatpush.msra.mxu0 0.0
        %1433 = vmatpush.msra.mxu0 0.0
        %1434 = vmatpush.msra.mxu0 0.0
        %1435 = vmatpush.msra.mxu0 0.0
        %1436 = vmatpush.msra.mxu0 %v1413
        %1437 = vmatpush.msra.mxu0 %v1411
        %1438 = vmatmul.f32.gmra.mxu0 %v1417
        %v1439 = vpop.f32.mrf.mxu0
        %v1440 = vadd.f32 0.0, %v1439
        %1441 = vmatmul.f32.gmra.mxu0 %v1420
        %v1442 = vpop.f32.mrf.mxu0
        %v1443 = vadd.f32 0.0, %v1442
        %1444 = vdwg.mxu0
        %1447 = vrot.lane.b32.xlu0 %v374, 120
        %v1448 = vpop.permute.xlu0 %1447
        %1449 = vrot.lane.b32.xlu0 %v375, 120
        %v1450 = vpop.permute.xlu0 %1449
        %v1454 = vsel %vm682, %v1367, 0
        %v1457 = vsel %vm682, %v1368, 0
        %1459 = vmatpush.msra.mxu0 0.0
        %1460 = vmatpush.msra.mxu0 0.0
        %1461 = vmatpush.msra.mxu0 0.0
        %1462 = vmatpush.msra.mxu0 0.0
        %1463 = vmatpush.msra.mxu0 0.0
        %1464 = vmatpush.msra.mxu0 0.0
        %1465 = vmatpush.msra.mxu0 0.0
        %1466 = vmatpush.msra.mxu0 0.0
        %1467 = vmatpush.msra.mxu0 0.0
        %1468 = vmatpush.msra.mxu0 0.0
        %1469 = vmatpush.msra.mxu0 0.0
        %1470 = vmatpush.msra.mxu0 0.0
        %1471 = vmatpush.msra.mxu0 0.0
        %1472 = vmatpush.msra.mxu0 0.0
        %1473 = vmatpush.msra.mxu0 %v1450
        %1474 = vmatpush.msra.mxu0 %v1448
        %1475 = vmatmul.f32.gmra.mxu0 %v1454
        %v1476 = vpop.f32.mrf.mxu0
        %v1477 = vadd.f32 0.0, %v1476
        %1478 = vmatmul.f32.gmra.mxu0 %v1457
        %v1479 = vpop.f32.mrf.mxu0
        %v1480 = vadd.f32 0.0, %v1479
        %1481 = vdwg.mxu0
        %1484 = vrot.lane.b32.xlu0 %v376, 120
        %v1485 = vpop.permute.xlu0 %1484
        %1486 = vrot.lane.b32.xlu0 %v377, 120
        %v1487 = vpop.permute.xlu0 %1486
        %v1491 = vsel %vm682, %v1369, 0
        %v1494 = vsel %vm682, %v1370, 0
        %1496 = vmatpush.msra.mxu0 0.0
        %1497 = vmatpush.msra.mxu0 0.0
        %1498 = vmatpush.msra.mxu0 0.0
        %1499 = vmatpush.msra.mxu0 0.0
        %1500 = vmatpush.msra.mxu0 0.0
        %1501 = vmatpush.msra.mxu0 0.0
        %1502 = vmatpush.msra.mxu0 0.0
        %1503 = vmatpush.msra.mxu0 0.0
        %1504 = vmatpush.msra.mxu0 0.0
        %1505 = vmatpush.msra.mxu0 0.0
        %1506 = vmatpush.msra.mxu0 0.0
        %1507 = vmatpush.msra.mxu0 0.0
        %1508 = vmatpush.msra.mxu0 0.0
        %1509 = vmatpush.msra.mxu0 0.0
        %1510 = vmatpush.msra.mxu0 %v1487
        %1511 = vmatpush.msra.mxu0 %v1485
        %1512 = vmatmul.f32.gmra.mxu0 %v1491
        %v1513 = vpop.f32.mrf.mxu0
        %v1514 = vadd.f32 0.0, %v1513
        %1515 = vmatmul.f32.gmra.mxu0 %v1494
        %v1516 = vpop.f32.mrf.mxu0
        %v1517 = vadd.f32 0.0, %v1516
        %1518 = vdwg.mxu0
        %1527 = vrot.lane.b32.xlu0 %v1403, 8
        %v1528 = vpop.permute.xlu0 %1527
        %1529 = vrot.lane.b32.xlu0 %v1406, 8
        %v1530 = vpop.permute.xlu0 %1529
        %1531 = vrot.lane.b32.xlu0 %v1440, 8
        %v1532 = vpop.permute.xlu0 %1531
        %1533 = vrot.lane.b32.xlu0 %v1443, 8
        %v1534 = vpop.permute.xlu0 %1533
        %1535 = vrot.lane.b32.xlu0 %v1477, 8
        %v1536 = vpop.permute.xlu0 %1535
        %1537 = vrot.lane.b32.xlu0 %v1480, 8
        %v1538 = vpop.permute.xlu0 %1537
        %1539 = vrot.lane.b32.xlu0 %v1514, 8
        %v1540 = vpop.permute.xlu0 %1539
        %1541 = vrot.lane.b32.xlu0 %v1517, 8
        %v1542 = vpop.permute.xlu0 %1541
        %vm1551 = vcmask 130112
        %1552 = vst.msk [vmem:[#allocation2] sm:$0xff] %vm1551, %v1528
        %1553 = vst.msk [vmem:[#allocation2 + $0x8] sm:$0xff] %vm1551, %v1530
        %1554 = vst.msk [vmem:[#allocation2 + $0x10] sm:$0xff] %vm1551, %v1532
        %1555 = vst.msk [vmem:[#allocation2 + $0x18] sm:$0xff] %vm1551, %v1534
        %1556 = vst.msk [vmem:[#allocation2 + $0x20] sm:$0xff] %vm1551, %v1536
        %1557 = vst.msk [vmem:[#allocation2 + $0x28] sm:$0xff] %vm1551, %v1538
        %1558 = vst.msk [vmem:[#allocation2 + $0x30] sm:$0xff] %vm1551, %v1540
        %1559 = vst.msk [vmem:[#allocation2 + $0x38] sm:$0xff] %vm1551, %v1542
        %1560 = vrot.lane.b32.xlu0 %v429, 112
        %v1561 = vpop.permute.xlu0 %1560
        %1562 = vrot.lane.b32.xlu0 %v432, 112
        %v1563 = vpop.permute.xlu0 %1562
        %1564 = vrot.lane.b32.xlu0 %v478, 112
        %v1565 = vpop.permute.xlu0 %1564
        %1566 = vrot.lane.b32.xlu0 %v481, 112
        %v1567 = vpop.permute.xlu0 %1566
        %v1568 = vsel %vm533, %v1561, 0
        %v1570 = vsel %vm533, %v1563, 0
        %v1572 = vsel %vm533, %v1565, 0
        %v1574 = vsel %vm533, %v1567, 0
        %1576 = vmatpush.xpose.msra.mxu0 0.0
        %1577 = vmatpush.xpose.msra.mxu0 0.0
        %1578 = vmatpush.xpose.msra.mxu0 0.0
        %1579 = vmatpush.xpose.msra.mxu0 0.0
        %1580 = vmatpush.xpose.msra.mxu0 0.0
        %1581 = vmatpush.xpose.msra.mxu0 0.0
        %1582 = vmatpush.xpose.msra.mxu0 0.0
        %1583 = vmatpush.xpose.msra.mxu0 0.0
        %1584 = vmatpush.xpose.msra.mxu0 0.0
        %1585 = vmatpush.xpose.msra.mxu0 0.0
        %1586 = vmatpush.xpose.msra.mxu0 0.0
        %1587 = vmatpush.xpose.msra.mxu0 0.0
        %1588 = vmatpush.xpose.msra.mxu0 0.0
        %1589 = vmatpush.xpose.msra.mxu0 0.0
        %1590 = vmatpush.xpose.msra.mxu0 %v1574
        %1591 = vmatpush.xpose.msra.mxu0 %v1572
        %1592 = vmatmul.f32.gmra.mxu0 %v1568
        %v1593 = vpop.f32.mrf.mxu0
        %v1594 = vadd.f32 0.0, %v1593
        %1595 = vmatmul.f32.gmra.mxu0 %v1570
        %v1596 = vpop.f32.mrf.mxu0
        %v1597 = vadd.f32 0.0, %v1596
        %1598 = vdwg.mxu0
        %1599 = vrot.lane.b32.xlu0 %v435, 112
        %v1600 = vpop.permute.xlu0 %1599
        %1601 = vrot.lane.b32.xlu0 %v438, 112
        %v1602 = vpop.permute.xlu0 %1601
        %1603 = vrot.lane.b32.xlu0 %v484, 112
        %v1604 = vpop.permute.xlu0 %1603
        %1605 = vrot.lane.b32.xlu0 %v487, 112
        %v1606 = vpop.permute.xlu0 %1605
        %v1607 = vsel %vm533, %v1600, 0
        %v1609 = vsel %vm533, %v1602, 0
        %v1611 = vsel %vm533, %v1604, 0
        %v1613 = vsel %vm533, %v1606, 0
        %1615 = vmatpush.xpose.msra.mxu0 0.0
        %1616 = vmatpush.xpose.msra.mxu0 0.0
        %1617 = vmatpush.xpose.msra.mxu0 0.0
        %1618 = vmatpush.xpose.msra.mxu0 0.0
        %1619 = vmatpush.xpose.msra.mxu0 0.0
        %1620 = vmatpush.xpose.msra.mxu0 0.0
        %1621 = vmatpush.xpose.msra.mxu0 0.0
        %1622 = vmatpush.xpose.msra.mxu0 0.0
        %1623 = vmatpush.xpose.msra.mxu0 0.0
        %1624 = vmatpush.xpose.msra.mxu0 0.0
        %1625 = vmatpush.xpose.msra.mxu0 0.0
        %1626 = vmatpush.xpose.msra.mxu0 0.0
        %1627 = vmatpush.xpose.msra.mxu0 0.0
        %1628 = vmatpush.xpose.msra.mxu0 0.0
        %1629 = vmatpush.xpose.msra.mxu0 %v1613
        %1630 = vmatpush.xpose.msra.mxu0 %v1611
        %1631 = vmatmul.f32.gmra.mxu0 %v1607
        %v1632 = vpop.f32.mrf.mxu0
        %v1633 = vadd.f32 0.0, %v1632
        %1634 = vmatmul.f32.gmra.mxu0 %v1609
        %v1635 = vpop.f32.mrf.mxu0
        %v1636 = vadd.f32 0.0, %v1635
        %1637 = vdwg.mxu0
        %1638 = vrot.lane.b32.xlu0 %v441, 112
        %v1639 = vpop.permute.xlu0 %1638
        %1640 = vrot.lane.b32.xlu0 %v444, 112
        %v1641 = vpop.permute.xlu0 %1640
        %1642 = vrot.lane.b32.xlu0 %v490, 112
        %v1643 = vpop.permute.xlu0 %1642
        %1644 = vrot.lane.b32.xlu0 %v493, 112
        %v1645 = vpop.permute.xlu0 %1644
        %v1646 = vsel %vm533, %v1639, 0
        %v1648 = vsel %vm533, %v1641, 0
        %v1650 = vsel %vm533, %v1643, 0
        %v1652 = vsel %vm533, %v1645, 0
        %1654 = vmatpush.xpose.msra.mxu0 0.0
        %1655 = vmatpush.xpose.msra.mxu0 0.0
        %1656 = vmatpush.xpose.msra.mxu0 0.0
        %1657 = vmatpush.xpose.msra.mxu0 0.0
        %1658 = vmatpush.xpose.msra.mxu0 0.0
        %1659 = vmatpush.xpose.msra.mxu0 0.0
        %1660 = vmatpush.xpose.msra.mxu0 0.0
        %1661 = vmatpush.xpose.msra.mxu0 0.0
        %1662 = vmatpush.xpose.msra.mxu0 0.0
        %1663 = vmatpush.xpose.msra.mxu0 0.0
        %1664 = vmatpush.xpose.msra.mxu0 0.0
        %1665 = vmatpush.xpose.msra.mxu0 0.0
        %1666 = vmatpush.xpose.msra.mxu0 0.0
        %1667 = vmatpush.xpose.msra.mxu0 0.0
        %1668 = vmatpush.xpose.msra.mxu0 %v1652
        %1669 = vmatpush.xpose.msra.mxu0 %v1650
        %1670 = vmatmul.f32.gmra.mxu0 %v1646
        %v1671 = vpop.f32.mrf.mxu0
        %v1672 = vadd.f32 0.0, %v1671
        %1673 = vmatmul.f32.gmra.mxu0 %v1648
        %v1674 = vpop.f32.mrf.mxu0
        %v1675 = vadd.f32 0.0, %v1674
        %1676 = vdwg.mxu0
        %1677 = vrot.lane.b32.xlu0 %v447, 112
        %v1678 = vpop.permute.xlu0 %1677
        %1679 = vrot.lane.b32.xlu0 %v450, 112
        %v1680 = vpop.permute.xlu0 %1679
        %1681 = vrot.lane.b32.xlu0 %v496, 112
        %v1682 = vpop.permute.xlu0 %1681
        %1683 = vrot.lane.b32.xlu0 %v499, 112
        %v1684 = vpop.permute.xlu0 %1683
        %v1685 = vsel %vm533, %v1678, 0
        %v1687 = vsel %vm533, %v1680, 0
        %v1689 = vsel %vm533, %v1682, 0
        %v1691 = vsel %vm533, %v1684, 0
        %1693 = vmatpush.xpose.msra.mxu0 0.0
        %1694 = vmatpush.xpose.msra.mxu0 0.0
        %1695 = vmatpush.xpose.msra.mxu0 0.0
        %1696 = vmatpush.xpose.msra.mxu0 0.0
        %1697 = vmatpush.xpose.msra.mxu0 0.0
        %1698 = vmatpush.xpose.msra.mxu0 0.0
        %1699 = vmatpush.xpose.msra.mxu0 0.0
        %1700 = vmatpush.xpose.msra.mxu0 0.0
        %1701 = vmatpush.xpose.msra.mxu0 0.0
        %1702 = vmatpush.xpose.msra.mxu0 0.0
        %1703 = vmatpush.xpose.msra.mxu0 0.0
        %1704 = vmatpush.xpose.msra.mxu0 0.0
        %1705 = vmatpush.xpose.msra.mxu0 0.0
        %1706 = vmatpush.xpose.msra.mxu0 0.0
        %1707 = vmatpush.xpose.msra.mxu0 %v1691
        %1708 = vmatpush.xpose.msra.mxu0 %v1689
        %1709 = vmatmul.f32.gmra.mxu0 %v1685
        %v1710 = vpop.f32.mrf.mxu0
        %v1711 = vadd.f32 0.0, %v1710
        %1712 = vmatmul.f32.gmra.mxu0 %v1687
        %v1713 = vpop.f32.mrf.mxu0
        %v1714 = vadd.f32 0.0, %v1713
        %1715 = vdwg.mxu0
        %v1716 = vadd.f32 %v1594, %v517
        %v1717 = vadd.f32 %v1597, %v518
        %v1718 = vadd.f32 %v1633, %v519
        %v1719 = vadd.f32 %v1636, %v520
        %v1720 = vadd.f32 %v1672, %v521
        %v1721 = vadd.f32 %v1675, %v522
        %v1722 = vadd.f32 %v1711, %v523
        %v1723 = vadd.f32 %v1714, %v524
        %v1724 = vsel %vm682, %v1716, -inf
        %1725 = vmax.xlane.f32.xlu0 %v1724
        %v1726 = vpop.xlane.xlu0 %1725
        %v1727 = vsel %vm682, %v1717, -inf
        %1728 = vmax.xlane.f32.xlu0 %v1727
        %v1729 = vpop.xlane.xlu0 %1728
        %v1730 = vsel %vm682, %v1718, -inf
        %1731 = vmax.xlane.f32.xlu0 %v1730
        %v1732 = vpop.xlane.xlu0 %1731
        %v1733 = vsel %vm682, %v1719, -inf
        %1734 = vmax.xlane.f32.xlu0 %v1733
        %v1735 = vpop.xlane.xlu0 %1734
        %v1736 = vsel %vm682, %v1720, -inf
        %1737 = vmax.xlane.f32.xlu0 %v1736
        %v1738 = vpop.xlane.xlu0 %1737
        %v1739 = vsel %vm682, %v1721, -inf
        %1740 = vmax.xlane.f32.xlu0 %v1739
        %v1741 = vpop.xlane.xlu0 %1740
        %v1742 = vsel %vm682, %v1722, -inf
        %1743 = vmax.xlane.f32.xlu0 %v1742
        %v1744 = vpop.xlane.xlu0 %1743
        %v1745 = vsel %vm682, %v1723, -inf
        %1746 = vmax.xlane.f32.xlu0 %v1745
        %v1747 = vpop.xlane.xlu0 %1746
        %v1748 = vsub.f32 %v1716, %v1726
        %v1749 = vsub.f32 %v1717, %v1729
        %v1750 = vsub.f32 %v1718, %v1732
        %v1751 = vsub.f32 %v1719, %v1735
        %v1752 = vsub.f32 %v1720, %v1738
        %v1753 = vsub.f32 %v1721, %v1741
        %v1754 = vsub.f32 %v1722, %v1744
        %v1755 = vsub.f32 %v1723, %v1747
        %v1756 = vmul.f32 %v1748, 1.442695
        %v1757 = vpow.pop %v1756
        %v1758 = vmul.f32 %v1749, 1.442695
        %v1759 = vpow.pop %v1758
        %v1760 = vmul.f32 %v1750, 1.442695
        %v1761 = vpow.pop %v1760
        %v1762 = vmul.f32 %v1751, 1.442695
        %v1763 = vpow.pop %v1762
        %v1764 = vmul.f32 %v1752, 1.442695
        %v1765 = vpow.pop %v1764
        %v1766 = vmul.f32 %v1753, 1.442695
        %v1767 = vpow.pop %v1766
        %v1768 = vmul.f32 %v1754, 1.442695
        %v1769 = vpow.pop %v1768
        %v1770 = vmul.f32 %v1755, 1.442695
        %v1771 = vpow.pop %v1770
        %v1772 = vsel %vm682, %v1757, 0.0
        %1773 = vadd.xlane.f32.xlu0 %v1772
        %v1774 = vpop.xlane.xlu0 %1773
        %v1775 = vsel %vm682, %v1759, 0.0
        %1776 = vadd.xlane.f32.xlu0 %v1775
        %v1777 = vpop.xlane.xlu0 %1776
        %v1778 = vsel %vm682, %v1761, 0.0
        %1779 = vadd.xlane.f32.xlu0 %v1778
        %v1780 = vpop.xlane.xlu0 %1779
        %v1781 = vsel %vm682, %v1763, 0.0
        %1782 = vadd.xlane.f32.xlu0 %v1781
        %v1783 = vpop.xlane.xlu0 %1782
        %v1784 = vsel %vm682, %v1765, 0.0
        %1785 = vadd.xlane.f32.xlu0 %v1784
        %v1786 = vpop.xlane.xlu0 %1785
        %v1787 = vsel %vm682, %v1767, 0.0
        %1788 = vadd.xlane.f32.xlu0 %v1787
        %v1789 = vpop.xlane.xlu0 %1788
        %v1790 = vsel %vm682, %v1769, 0.0
        %1791 = vadd.xlane.f32.xlu0 %v1790
        %v1792 = vpop.xlane.xlu0 %1791
        %v1793 = vsel %vm682, %v1771, 0.0
        %1794 = vadd.xlane.f32.xlu0 %v1793
        %v1795 = vpop.xlane.xlu0 %1794
        %v1796 = vrcp.pop %v1774
        %v1797 = vmul.f32 %v1774, %v1796
        %v1798 = vsub.f32 1.0, %v1797
        %v1799 = vmul.f32 %v1796, %v1798
        %v1800 = vadd.f32 %v1796, %v1799
        %vm1801 = vweird.f32 %v1774
        %vm1802 = vweird.f32 %v1796
        %vm1803 = vmor %vm1801, %vm1802
        %v1804 = vsel %vm1803, %v1796, %v1800
        %v1805 = vand.u32 2147483647, %v1774
        %vm1806 = vcmp.eq.f32.partialorder %v1805, 8.507059e+37
        %v1807 = vand.u32 %v1774, 2147483648
        %v1808 = vor.u32 1.1754944e-38, %v1807
        %v1809 = vsel %vm1806, %v1808, %v1804
        %v1810 = vmul.f32 1.0, %v1809
        %v1811 = vrcp.pop %v1777
        %v1812 = vmul.f32 %v1777, %v1811
        %v1813 = vsub.f32 1.0, %v1812
        %v1814 = vmul.f32 %v1811, %v1813
        %v1815 = vadd.f32 %v1811, %v1814
        %vm1816 = vweird.f32 %v1777
        %vm1817 = vweird.f32 %v1811
        %vm1818 = vmor %vm1816, %vm1817
        %v1819 = vsel %vm1818, %v1811, %v1815
        %v1820 = vand.u32 2147483647, %v1777
        %vm1821 = vcmp.eq.f32.partialorder %v1820, 8.507059e+37
        %v1822 = vand.u32 %v1777, 2147483648
        %v1823 = vor.u32 1.1754944e-38, %v1822
        %v1824 = vsel %vm1821, %v1823, %v1819
        %v1825 = vmul.f32 1.0, %v1824
        %v1826 = vrcp.pop %v1780
        %v1827 = vmul.f32 %v1780, %v1826
        %v1828 = vsub.f32 1.0, %v1827
        %v1829 = vmul.f32 %v1826, %v1828
        %v1830 = vadd.f32 %v1826, %v1829
        %vm1831 = vweird.f32 %v1780
        %vm1832 = vweird.f32 %v1826
        %vm1833 = vmor %vm1831, %vm1832
        %v1834 = vsel %vm1833, %v1826, %v1830
        %v1835 = vand.u32 2147483647, %v1780
        %vm1836 = vcmp.eq.f32.partialorder %v1835, 8.507059e+37
        %v1837 = vand.u32 %v1780, 2147483648
        %v1838 = vor.u32 1.1754944e-38, %v1837
        %v1839 = vsel %vm1836, %v1838, %v1834
        %v1840 = vmul.f32 1.0, %v1839
        %v1841 = vrcp.pop %v1783
        %v1842 = vmul.f32 %v1783, %v1841
        %v1843 = vsub.f32 1.0, %v1842
        %v1844 = vmul.f32 %v1841, %v1843
        %v1845 = vadd.f32 %v1841, %v1844
        %vm1846 = vweird.f32 %v1783
        %vm1847 = vweird.f32 %v1841
        %vm1848 = vmor %vm1846, %vm1847
        %v1849 = vsel %vm1848, %v1841, %v1845
        %v1850 = vand.u32 2147483647, %v1783
        %vm1851 = vcmp.eq.f32.partialorder %v1850, 8.507059e+37
        %v1852 = vand.u32 %v1783, 2147483648
        %v1853 = vor.u32 1.1754944e-38, %v1852
        %v1854 = vsel %vm1851, %v1853, %v1849
        %v1855 = vmul.f32 1.0, %v1854
        %v1856 = vrcp.pop %v1786
        %v1857 = vmul.f32 %v1786, %v1856
        %v1858 = vsub.f32 1.0, %v1857
        %v1859 = vmul.f32 %v1856, %v1858
        %v1860 = vadd.f32 %v1856, %v1859
        %vm1861 = vweird.f32 %v1786
        %vm1862 = vweird.f32 %v1856
        %vm1863 = vmor %vm1861, %vm1862
        %v1864 = vsel %vm1863, %v1856, %v1860
        %v1865 = vand.u32 2147483647, %v1786
        %vm1866 = vcmp.eq.f32.partialorder %v1865, 8.507059e+37
        %v1867 = vand.u32 %v1786, 2147483648
        %v1868 = vor.u32 1.1754944e-38, %v1867
        %v1869 = vsel %vm1866, %v1868, %v1864
        %v1870 = vmul.f32 1.0, %v1869
        %v1871 = vrcp.pop %v1789
        %v1872 = vmul.f32 %v1789, %v1871
        %v1873 = vsub.f32 1.0, %v1872
        %v1874 = vmul.f32 %v1871, %v1873
        %v1875 = vadd.f32 %v1871, %v1874
        %vm1876 = vweird.f32 %v1789
        %vm1877 = vweird.f32 %v1871
        %vm1878 = vmor %vm1876, %vm1877
        %v1879 = vsel %vm1878, %v1871, %v1875
        %v1880 = vand.u32 2147483647, %v1789
        %vm1881 = vcmp.eq.f32.partialorder %v1880, 8.507059e+37
        %v1882 = vand.u32 %v1789, 2147483648
        %v1883 = vor.u32 1.1754944e-38, %v1882
        %v1884 = vsel %vm1881, %v1883, %v1879
        %v1885 = vmul.f32 1.0, %v1884
        %v1886 = vrcp.pop %v1792
        %v1887 = vmul.f32 %v1792, %v1886
        %v1888 = vsub.f32 1.0, %v1887
        %v1889 = vmul.f32 %v1886, %v1888
        %v1890 = vadd.f32 %v1886, %v1889
        %vm1891 = vweird.f32 %v1792
        %vm1892 = vweird.f32 %v1886
        %vm1893 = vmor %vm1891, %vm1892
        %v1894 = vsel %vm1893, %v1886, %v1890
        %v1895 = vand.u32 2147483647, %v1792
        %vm1896 = vcmp.eq.f32.partialorder %v1895, 8.507059e+37
        %v1897 = vand.u32 %v1792, 2147483648
        %v1898 = vor.u32 1.1754944e-38, %v1897
        %v1899 = vsel %vm1896, %v1898, %v1894
        %v1900 = vmul.f32 1.0, %v1899
        %v1901 = vrcp.pop %v1795
        %v1902 = vmul.f32 %v1795, %v1901
        %v1903 = vsub.f32 1.0, %v1902
        %v1904 = vmul.f32 %v1901, %v1903
        %v1905 = vadd.f32 %v1901, %v1904
        %vm1906 = vweird.f32 %v1795
        %vm1907 = vweird.f32 %v1901
        %vm1908 = vmor %vm1906, %vm1907
        %v1909 = vsel %vm1908, %v1901, %v1905
        %v1910 = vand.u32 2147483647, %v1795
        %vm1911 = vcmp.eq.f32.partialorder %v1910, 8.507059e+37
        %v1912 = vand.u32 %v1795, 2147483648
        %v1913 = vor.u32 1.1754944e-38, %v1912
        %v1914 = vsel %vm1911, %v1913, %v1909
        %v1915 = vmul.f32 1.0, %v1914
        %v1916 = vmul.f32 %v1757, %v1810
        %v1917 = vmul.f32 %v1759, %v1825
        %v1918 = vmul.f32 %v1761, %v1840
        %v1919 = vmul.f32 %v1763, %v1855
        %v1920 = vmul.f32 %v1765, %v1870
        %v1921 = vmul.f32 %v1767, %v1885
        %v1922 = vmul.f32 %v1769, %v1900
        %v1923 = vmul.f32 %v1771, %v1915
        %1924 = vrot.lane.b32.xlu0 %v370, 112
        %v1925 = vpop.permute.xlu0 %1924
        %1926 = vrot.lane.b32.xlu0 %v371, 112
        %v1927 = vpop.permute.xlu0 %1926
        %v1931 = vsel %vm682, %v1916, 0
        %v1934 = vsel %vm682, %v1917, 0
        %1936 = vmatpush.msra.mxu0 0.0
        %1937 = vmatpush.msra.mxu0 0.0
        %1938 = vmatpush.msra.mxu0 0.0
        %1939 = vmatpush.msra.mxu0 0.0
        %1940 = vmatpush.msra.mxu0 0.0
        %1941 = vmatpush.msra.mxu0 0.0
        %1942 = vmatpush.msra.mxu0 0.0
        %1943 = vmatpush.msra.mxu0 0.0
        %1944 = vmatpush.msra.mxu0 0.0
        %1945 = vmatpush.msra.mxu0 0.0
        %1946 = vmatpush.msra.mxu0 0.0
        %1947 = vmatpush.msra.mxu0 0.0
        %1948 = vmatpush.msra.mxu0 0.0
        %1949 = vmatpush.msra.mxu0 0.0
        %1950 = vmatpush.msra.mxu0 %v1927
        %1951 = vmatpush.msra.mxu0 %v1925
        %1952 = vmatmul.f32.gmra.mxu0 %v1931
        %v1953 = vpop.f32.mrf.mxu0
        %v1954 = vadd.f32 0.0, %v1953
        %1955 = vmatmul.f32.gmra.mxu0 %v1934
        %v1956 = vpop.f32.mrf.mxu0
        %v1957 = vadd.f32 0.0, %v1956
        %1958 = vdwg.mxu0
        %1959 = vrot.lane.b32.xlu0 %v372, 112
        %v1960 = vpop.permute.xlu0 %1959
        %1961 = vrot.lane.b32.xlu0 %v373, 112
        %v1962 = vpop.permute.xlu0 %1961
        %v1966 = vsel %vm682, %v1918, 0
        %v1969 = vsel %vm682, %v1919, 0
        %1971 = vmatpush.msra.mxu0 0.0
        %1972 = vmatpush.msra.mxu0 0.0
        %1973 = vmatpush.msra.mxu0 0.0
        %1974 = vmatpush.msra.mxu0 0.0
        %1975 = vmatpush.msra.mxu0 0.0
        %1976 = vmatpush.msra.mxu0 0.0
        %1977 = vmatpush.msra.mxu0 0.0
        %1978 = vmatpush.msra.mxu0 0.0
        %1979 = vmatpush.msra.mxu0 0.0
        %1980 = vmatpush.msra.mxu0 0.0
        %1981 = vmatpush.msra.mxu0 0.0
        %1982 = vmatpush.msra.mxu0 0.0
        %1983 = vmatpush.msra.mxu0 0.0
        %1984 = vmatpush.msra.mxu0 0.0
        %1985 = vmatpush.msra.mxu0 %v1962
        %1986 = vmatpush.msra.mxu0 %v1960
        %1987 = vmatmul.f32.gmra.mxu0 %v1966
        %v1988 = vpop.f32.mrf.mxu0
        %v1989 = vadd.f32 0.0, %v1988
        %1990 = vmatmul.f32.gmra.mxu0 %v1969
        %v1991 = vpop.f32.mrf.mxu0
        %v1992 = vadd.f32 0.0, %v1991
        %1993 = vdwg.mxu0
        %1994 = vrot.lane.b32.xlu0 %v374, 112
        %v1995 = vpop.permute.xlu0 %1994
        %1996 = vrot.lane.b32.xlu0 %v375, 112
        %v1997 = vpop.permute.xlu0 %1996
        %v2001 = vsel %vm682, %v1920, 0
        %v2004 = vsel %vm682, %v1921, 0
        %2006 = vmatpush.msra.mxu0 0.0
        %2007 = vmatpush.msra.mxu0 0.0
        %2008 = vmatpush.msra.mxu0 0.0
        %2009 = vmatpush.msra.mxu0 0.0
        %2010 = vmatpush.msra.mxu0 0.0
        %2011 = vmatpush.msra.mxu0 0.0
        %2012 = vmatpush.msra.mxu0 0.0
        %2013 = vmatpush.msra.mxu0 0.0
        %2014 = vmatpush.msra.mxu0 0.0
        %2015 = vmatpush.msra.mxu0 0.0
        %2016 = vmatpush.msra.mxu0 0.0
        %2017 = vmatpush.msra.mxu0 0.0
        %2018 = vmatpush.msra.mxu0 0.0
        %2019 = vmatpush.msra.mxu0 0.0
        %2020 = vmatpush.msra.mxu0 %v1997
        %2021 = vmatpush.msra.mxu0 %v1995
        %2022 = vmatmul.f32.gmra.mxu0 %v2001
        %v2023 = vpop.f32.mrf.mxu0
        %v2024 = vadd.f32 0.0, %v2023
        %2025 = vmatmul.f32.gmra.mxu0 %v2004
        %v2026 = vpop.f32.mrf.mxu0
        %v2027 = vadd.f32 0.0, %v2026
        %2028 = vdwg.mxu0
        %2029 = vrot.lane.b32.xlu0 %v376, 112
        %v2030 = vpop.permute.xlu0 %2029
        %2031 = vrot.lane.b32.xlu0 %v377, 112
        %v2032 = vpop.permute.xlu0 %2031
        %v2036 = vsel %vm682, %v1922, 0
        %v2039 = vsel %vm682, %v1923, 0
        %2041 = vmatpush.msra.mxu0 0.0
        %2042 = vmatpush.msra.mxu0 0.0
        %2043 = vmatpush.msra.mxu0 0.0
        %2044 = vmatpush.msra.mxu0 0.0
        %2045 = vmatpush.msra.mxu0 0.0
        %2046 = vmatpush.msra.mxu0 0.0
        %2047 = vmatpush.msra.mxu0 0.0
        %2048 = vmatpush.msra.mxu0 0.0
        %2049 = vmatpush.msra.mxu0 0.0
        %2050 = vmatpush.msra.mxu0 0.0
        %2051 = vmatpush.msra.mxu0 0.0
        %2052 = vmatpush.msra.mxu0 0.0
        %2053 = vmatpush.msra.mxu0 0.0
        %2054 = vmatpush.msra.mxu0 0.0
        %2055 = vmatpush.msra.mxu0 %v2032
        %2056 = vmatpush.msra.mxu0 %v2030
        %2057 = vmatmul.f32.gmra.mxu0 %v2036
        %v2058 = vpop.f32.mrf.mxu0
        %v2059 = vadd.f32 0.0, %v2058
        %2060 = vmatmul.f32.gmra.mxu0 %v2039
        %v2061 = vpop.f32.mrf.mxu0
        %v2062 = vadd.f32 0.0, %v2061
        %2063 = vdwg.mxu0
        %2072 = vrot.lane.b32.xlu0 %v1954, 16
        %v2073 = vpop.permute.xlu0 %2072
        %2074 = vrot.lane.b32.xlu0 %v1957, 16
        %v2075 = vpop.permute.xlu0 %2074
        %2076 = vrot.lane.b32.xlu0 %v1989, 16
        %v2077 = vpop.permute.xlu0 %2076
        %2078 = vrot.lane.b32.xlu0 %v1992, 16
        %v2079 = vpop.permute.xlu0 %2078
        %2080 = vrot.lane.b32.xlu0 %v2024, 16
        %v2081 = vpop.permute.xlu0 %2080
        %2082 = vrot.lane.b32.xlu0 %v2027, 16
        %v2083 = vpop.permute.xlu0 %2082
        %2084 = vrot.lane.b32.xlu0 %v2059, 16
        %v2085 = vpop.permute.xlu0 %2084
        %2086 = vrot.lane.b32.xlu0 %v2062, 16
        %v2087 = vpop.permute.xlu0 %2086
        %vm2096 = vcmask 195712
        %2097 = vst.msk [vmem:[#allocation2] sm:$0xff] %vm2096, %v2073
        %2098 = vst.msk [vmem:[#allocation2 + $0x8] sm:$0xff] %vm2096, %v2075
        %2099 = vst.msk [vmem:[#allocation2 + $0x10] sm:$0xff] %vm2096, %v2077
        %2100 = vst.msk [vmem:[#allocation2 + $0x18] sm:$0xff] %vm2096, %v2079
        %2101 = vst.msk [vmem:[#allocation2 + $0x20] sm:$0xff] %vm2096, %v2081
        %2102 = vst.msk [vmem:[#allocation2 + $0x28] sm:$0xff] %vm2096, %v2083
        %2103 = vst.msk [vmem:[#allocation2 + $0x30] sm:$0xff] %vm2096, %v2085
        %2104 = vst.msk [vmem:[#allocation2 + $0x38] sm:$0xff] %vm2096, %v2087
        %2105 = vrot.lane.b32.xlu0 %v429, 104
        %v2106 = vpop.permute.xlu0 %2105
        %2107 = vrot.lane.b32.xlu0 %v432, 104
        %v2108 = vpop.permute.xlu0 %2107
        %2109 = vrot.lane.b32.xlu0 %v478, 104
        %v2110 = vpop.permute.xlu0 %2109
        %2111 = vrot.lane.b32.xlu0 %v481, 104
        %v2112 = vpop.permute.xlu0 %2111
        %v2113 = vsel %vm533, %v2106, 0
        %v2115 = vsel %vm533, %v2108, 0
        %v2117 = vsel %vm533, %v2110, 0
        %v2119 = vsel %vm533, %v2112, 0
        %2121 = vmatpush.xpose.msra.mxu0 0.0
        %2122 = vmatpush.xpose.msra.mxu0 0.0
        %2123 = vmatpush.xpose.msra.mxu0 0.0
        %2124 = vmatpush.xpose.msra.mxu0 0.0
        %2125 = vmatpush.xpose.msra.mxu0 0.0
        %2126 = vmatpush.xpose.msra.mxu0 0.0
        %2127 = vmatpush.xpose.msra.mxu0 0.0
        %2128 = vmatpush.xpose.msra.mxu0 0.0
        %2129 = vmatpush.xpose.msra.mxu0 0.0
        %2130 = vmatpush.xpose.msra.mxu0 0.0
        %2131 = vmatpush.xpose.msra.mxu0 0.0
        %2132 = vmatpush.xpose.msra.mxu0 0.0
        %2133 = vmatpush.xpose.msra.mxu0 0.0
        %2134 = vmatpush.xpose.msra.mxu0 0.0
        %2135 = vmatpush.xpose.msra.mxu0 %v2119
        %2136 = vmatpush.xpose.msra.mxu0 %v2117
        %2137 = vmatmul.f32.gmra.mxu0 %v2113
        %v2138 = vpop.f32.mrf.mxu0
        %v2139 = vadd.f32 0.0, %v2138
        %2140 = vmatmul.f32.gmra.mxu0 %v2115
        %v2141 = vpop.f32.mrf.mxu0
        %v2142 = vadd.f32 0.0, %v2141
        %2143 = vdwg.mxu0
        %2144 = vrot.lane.b32.xlu0 %v435, 104
        %v2145 = vpop.permute.xlu0 %2144
        %2146 = vrot.lane.b32.xlu0 %v438, 104
        %v2147 = vpop.permute.xlu0 %2146
        %2148 = vrot.lane.b32.xlu0 %v484, 104
        %v2149 = vpop.permute.xlu0 %2148
        %2150 = vrot.lane.b32.xlu0 %v487, 104
        %v2151 = vpop.permute.xlu0 %2150
        %v2152 = vsel %vm533, %v2145, 0
        %v2154 = vsel %vm533, %v2147, 0
        %v2156 = vsel %vm533, %v2149, 0
        %v2158 = vsel %vm533, %v2151, 0
        %2160 = vmatpush.xpose.msra.mxu0 0.0
        %2161 = vmatpush.xpose.msra.mxu0 0.0
        %2162 = vmatpush.xpose.msra.mxu0 0.0
        %2163 = vmatpush.xpose.msra.mxu0 0.0
        %2164 = vmatpush.xpose.msra.mxu0 0.0
        %2165 = vmatpush.xpose.msra.mxu0 0.0
        %2166 = vmatpush.xpose.msra.mxu0 0.0
        %2167 = vmatpush.xpose.msra.mxu0 0.0
        %2168 = vmatpush.xpose.msra.mxu0 0.0
        %2169 = vmatpush.xpose.msra.mxu0 0.0
        %2170 = vmatpush.xpose.msra.mxu0 0.0
        %2171 = vmatpush.xpose.msra.mxu0 0.0
        %2172 = vmatpush.xpose.msra.mxu0 0.0
        %2173 = vmatpush.xpose.msra.mxu0 0.0
        %2174 = vmatpush.xpose.msra.mxu0 %v2158
        %2175 = vmatpush.xpose.msra.mxu0 %v2156
        %2176 = vmatmul.f32.gmra.mxu0 %v2152
        %v2177 = vpop.f32.mrf.mxu0
        %v2178 = vadd.f32 0.0, %v2177
        %2179 = vmatmul.f32.gmra.mxu0 %v2154
        %v2180 = vpop.f32.mrf.mxu0
        %v2181 = vadd.f32 0.0, %v2180
        %2182 = vdwg.mxu0
        %2183 = vrot.lane.b32.xlu0 %v441, 104
        %v2184 = vpop.permute.xlu0 %2183
        %2185 = vrot.lane.b32.xlu0 %v444, 104
        %v2186 = vpop.permute.xlu0 %2185
        %2187 = vrot.lane.b32.xlu0 %v490, 104
        %v2188 = vpop.permute.xlu0 %2187
        %2189 = vrot.lane.b32.xlu0 %v493, 104
        %v2190 = vpop.permute.xlu0 %2189
        %v2191 = vsel %vm533, %v2184, 0
        %v2193 = vsel %vm533, %v2186, 0
        %v2195 = vsel %vm533, %v2188, 0
        %v2197 = vsel %vm533, %v2190, 0
        %2199 = vmatpush.xpose.msra.mxu0 0.0
        %2200 = vmatpush.xpose.msra.mxu0 0.0
        %2201 = vmatpush.xpose.msra.mxu0 0.0
        %2202 = vmatpush.xpose.msra.mxu0 0.0
        %2203 = vmatpush.xpose.msra.mxu0 0.0
        %2204 = vmatpush.xpose.msra.mxu0 0.0
        %2205 = vmatpush.xpose.msra.mxu0 0.0
        %2206 = vmatpush.xpose.msra.mxu0 0.0
        %2207 = vmatpush.xpose.msra.mxu0 0.0
        %2208 = vmatpush.xpose.msra.mxu0 0.0
        %2209 = vmatpush.xpose.msra.mxu0 0.0
        %2210 = vmatpush.xpose.msra.mxu0 0.0
        %2211 = vmatpush.xpose.msra.mxu0 0.0
        %2212 = vmatpush.xpose.msra.mxu0 0.0
        %2213 = vmatpush.xpose.msra.mxu0 %v2197
        %2214 = vmatpush.xpose.msra.mxu0 %v2195
        %2215 = vmatmul.f32.gmra.mxu0 %v2191
        %v2216 = vpop.f32.mrf.mxu0
        %v2217 = vadd.f32 0.0, %v2216
        %2218 = vmatmul.f32.gmra.mxu0 %v2193
        %v2219 = vpop.f32.mrf.mxu0
        %v2220 = vadd.f32 0.0, %v2219
        %2221 = vdwg.mxu0
        %2222 = vrot.lane.b32.xlu0 %v447, 104
        %v2223 = vpop.permute.xlu0 %2222
        %2224 = vrot.lane.b32.xlu0 %v450, 104
        %v2225 = vpop.permute.xlu0 %2224
        %2226 = vrot.lane.b32.xlu0 %v496, 104
        %v2227 = vpop.permute.xlu0 %2226
        %2228 = vrot.lane.b32.xlu0 %v499, 104
        %v2229 = vpop.permute.xlu0 %2228
        %v2230 = vsel %vm533, %v2223, 0
        %v2232 = vsel %vm533, %v2225, 0
        %v2234 = vsel %vm533, %v2227, 0
        %v2236 = vsel %vm533, %v2229, 0
        %2238 = vmatpush.xpose.msra.mxu0 0.0
        %2239 = vmatpush.xpose.msra.mxu0 0.0
        %2240 = vmatpush.xpose.msra.mxu0 0.0
        %2241 = vmatpush.xpose.msra.mxu0 0.0
        %2242 = vmatpush.xpose.msra.mxu0 0.0
        %2243 = vmatpush.xpose.msra.mxu0 0.0
        %2244 = vmatpush.xpose.msra.mxu0 0.0
        %2245 = vmatpush.xpose.msra.mxu0 0.0
        %2246 = vmatpush.xpose.msra.mxu0 0.0
        %2247 = vmatpush.xpose.msra.mxu0 0.0
        %2248 = vmatpush.xpose.msra.mxu0 0.0
        %2249 = vmatpush.xpose.msra.mxu0 0.0
        %2250 = vmatpush.xpose.msra.mxu0 0.0
        %2251 = vmatpush.xpose.msra.mxu0 0.0
        %2252 = vmatpush.xpose.msra.mxu0 %v2236
        %2253 = vmatpush.xpose.msra.mxu0 %v2234
        %2254 = vmatmul.f32.gmra.mxu0 %v2230
        %v2255 = vpop.f32.mrf.mxu0
        %v2256 = vadd.f32 0.0, %v2255
        %2257 = vmatmul.f32.gmra.mxu0 %v2232
        %v2258 = vpop.f32.mrf.mxu0
        %v2259 = vadd.f32 0.0, %v2258
        %2260 = vdwg.mxu0
        %v2261 = vadd.f32 %v2139, %v525
        %v2262 = vadd.f32 %v2142, %v526
        %v2263 = vadd.f32 %v2178, %v527
        %v2264 = vadd.f32 %v2181, %v528
        %v2265 = vadd.f32 %v2217, %v529
        %v2266 = vadd.f32 %v2220, %v530
        %v2267 = vadd.f32 %v2256, %v531
        %v2268 = vadd.f32 %v2259, %v532
        %v2269 = vsel %vm682, %v2261, -inf
        %2270 = vmax.xlane.f32.xlu0 %v2269
        %v2271 = vpop.xlane.xlu0 %2270
        %v2272 = vsel %vm682, %v2262, -inf
        %2273 = vmax.xlane.f32.xlu0 %v2272
        %v2274 = vpop.xlane.xlu0 %2273
        %v2275 = vsel %vm682, %v2263, -inf
        %2276 = vmax.xlane.f32.xlu0 %v2275
        %v2277 = vpop.xlane.xlu0 %2276
        %v2278 = vsel %vm682, %v2264, -inf
        %2279 = vmax.xlane.f32.xlu0 %v2278
        %v2280 = vpop.xlane.xlu0 %2279
        %v2281 = vsel %vm682, %v2265, -inf
        %2282 = vmax.xlane.f32.xlu0 %v2281
        %v2283 = vpop.xlane.xlu0 %2282
        %v2284 = vsel %vm682, %v2266, -inf
        %2285 = vmax.xlane.f32.xlu0 %v2284
        %v2286 = vpop.xlane.xlu0 %2285
        %v2287 = vsel %vm682, %v2267, -inf
        %2288 = vmax.xlane.f32.xlu0 %v2287
        %v2289 = vpop.xlane.xlu0 %2288
        %v2290 = vsel %vm682, %v2268, -inf
        %2291 = vmax.xlane.f32.xlu0 %v2290
        %v2292 = vpop.xlane.xlu0 %2291
        %v2293 = vsub.f32 %v2261, %v2271
        %v2294 = vsub.f32 %v2262, %v2274
        %v2295 = vsub.f32 %v2263, %v2277
        %v2296 = vsub.f32 %v2264, %v2280
        %v2297 = vsub.f32 %v2265, %v2283
        %v2298 = vsub.f32 %v2266, %v2286
        %v2299 = vsub.f32 %v2267, %v2289
        %v2300 = vsub.f32 %v2268, %v2292
        %v2301 = vmul.f32 %v2293, 1.442695
        %v2302 = vpow.pop %v2301
        %v2303 = vmul.f32 %v2294, 1.442695
        %v2304 = vpow.pop %v2303
        %v2305 = vmul.f32 %v2295, 1.442695
        %v2306 = vpow.pop %v2305
        %v2307 = vmul.f32 %v2296, 1.442695
        %v2308 = vpow.pop %v2307
        %v2309 = vmul.f32 %v2297, 1.442695
        %v2310 = vpow.pop %v2309
        %v2311 = vmul.f32 %v2298, 1.442695
        %v2312 = vpow.pop %v2311
        %v2313 = vmul.f32 %v2299, 1.442695
        %v2314 = vpow.pop %v2313
        %v2315 = vmul.f32 %v2300, 1.442695
        %v2316 = vpow.pop %v2315
        %v2317 = vsel %vm682, %v2302, 0.0
        %2318 = vadd.xlane.f32.xlu0 %v2317
        %v2319 = vpop.xlane.xlu0 %2318
        %v2320 = vsel %vm682, %v2304, 0.0
        %2321 = vadd.xlane.f32.xlu0 %v2320
        %v2322 = vpop.xlane.xlu0 %2321
        %v2323 = vsel %vm682, %v2306, 0.0
        %2324 = vadd.xlane.f32.xlu0 %v2323
        %v2325 = vpop.xlane.xlu0 %2324
        %v2326 = vsel %vm682, %v2308, 0.0
        %2327 = vadd.xlane.f32.xlu0 %v2326
        %v2328 = vpop.xlane.xlu0 %2327
        %v2329 = vsel %vm682, %v2310, 0.0
        %2330 = vadd.xlane.f32.xlu0 %v2329
        %v2331 = vpop.xlane.xlu0 %2330
        %v2332 = vsel %vm682, %v2312, 0.0
        %2333 = vadd.xlane.f32.xlu0 %v2332
        %v2334 = vpop.xlane.xlu0 %2333
        %v2335 = vsel %vm682, %v2314, 0.0
        %2336 = vadd.xlane.f32.xlu0 %v2335
        %v2337 = vpop.xlane.xlu0 %2336
        %v2338 = vsel %vm682, %v2316, 0.0
        %2339 = vadd.xlane.f32.xlu0 %v2338
        %v2340 = vpop.xlane.xlu0 %2339
        %v2341 = vrcp.pop %v2319
        %v2342 = vmul.f32 %v2319, %v2341
        %v2343 = vsub.f32 1.0, %v2342
        %v2344 = vmul.f32 %v2341, %v2343
        %v2345 = vadd.f32 %v2341, %v2344
        %vm2346 = vweird.f32 %v2319
        %vm2347 = vweird.f32 %v2341
        %vm2348 = vmor %vm2346, %vm2347
        %v2349 = vsel %vm2348, %v2341, %v2345
        %v2350 = vand.u32 2147483647, %v2319
        %vm2351 = vcmp.eq.f32.partialorder %v2350, 8.507059e+37
        %v2352 = vand.u32 %v2319, 2147483648
        %v2353 = vor.u32 1.1754944e-38, %v2352
        %v2354 = vsel %vm2351, %v2353, %v2349
        %v2355 = vmul.f32 1.0, %v2354
        %v2356 = vrcp.pop %v2322
        %v2357 = vmul.f32 %v2322, %v2356
        %v2358 = vsub.f32 1.0, %v2357
        %v2359 = vmul.f32 %v2356, %v2358
        %v2360 = vadd.f32 %v2356, %v2359
        %vm2361 = vweird.f32 %v2322
        %vm2362 = vweird.f32 %v2356
        %vm2363 = vmor %vm2361, %vm2362
        %v2364 = vsel %vm2363, %v2356, %v2360
        %v2365 = vand.u32 2147483647, %v2322
        %vm2366 = vcmp.eq.f32.partialorder %v2365, 8.507059e+37
        %v2367 = vand.u32 %v2322, 2147483648
        %v2368 = vor.u32 1.1754944e-38, %v2367
        %v2369 = vsel %vm2366, %v2368, %v2364
        %v2370 = vmul.f32 1.0, %v2369
        %v2371 = vrcp.pop %v2325
        %v2372 = vmul.f32 %v2325, %v2371
        %v2373 = vsub.f32 1.0, %v2372
        %v2374 = vmul.f32 %v2371, %v2373
        %v2375 = vadd.f32 %v2371, %v2374
        %vm2376 = vweird.f32 %v2325
        %vm2377 = vweird.f32 %v2371
        %vm2378 = vmor %vm2376, %vm2377
        %v2379 = vsel %vm2378, %v2371, %v2375
        %v2380 = vand.u32 2147483647, %v2325
        %vm2381 = vcmp.eq.f32.partialorder %v2380, 8.507059e+37
        %v2382 = vand.u32 %v2325, 2147483648
        %v2383 = vor.u32 1.1754944e-38, %v2382
        %v2384 = vsel %vm2381, %v2383, %v2379
        %v2385 = vmul.f32 1.0, %v2384
        %v2386 = vrcp.pop %v2328
        %v2387 = vmul.f32 %v2328, %v2386
        %v2388 = vsub.f32 1.0, %v2387
        %v2389 = vmul.f32 %v2386, %v2388
        %v2390 = vadd.f32 %v2386, %v2389
        %vm2391 = vweird.f32 %v2328
        %vm2392 = vweird.f32 %v2386
        %vm2393 = vmor %vm2391, %vm2392
        %v2394 = vsel %vm2393, %v2386, %v2390
        %v2395 = vand.u32 2147483647, %v2328
        %vm2396 = vcmp.eq.f32.partialorder %v2395, 8.507059e+37
        %v2397 = vand.u32 %v2328, 2147483648
        %v2398 = vor.u32 1.1754944e-38, %v2397
        %v2399 = vsel %vm2396, %v2398, %v2394
        %v2400 = vmul.f32 1.0, %v2399
        %v2401 = vrcp.pop %v2331
        %v2402 = vmul.f32 %v2331, %v2401
        %v2403 = vsub.f32 1.0, %v2402
        %v2404 = vmul.f32 %v2401, %v2403
        %v2405 = vadd.f32 %v2401, %v2404
        %vm2406 = vweird.f32 %v2331
        %vm2407 = vweird.f32 %v2401
        %vm2408 = vmor %vm2406, %vm2407
        %v2409 = vsel %vm2408, %v2401, %v2405
        %v2410 = vand.u32 2147483647, %v2331
        %vm2411 = vcmp.eq.f32.partialorder %v2410, 8.507059e+37
        %v2412 = vand.u32 %v2331, 2147483648
        %v2413 = vor.u32 1.1754944e-38, %v2412
        %v2414 = vsel %vm2411, %v2413, %v2409
        %v2415 = vmul.f32 1.0, %v2414
        %v2416 = vrcp.pop %v2334
        %v2417 = vmul.f32 %v2334, %v2416
        %v2418 = vsub.f32 1.0, %v2417
        %v2419 = vmul.f32 %v2416, %v2418
        %v2420 = vadd.f32 %v2416, %v2419
        %vm2421 = vweird.f32 %v2334
        %vm2422 = vweird.f32 %v2416
        %vm2423 = vmor %vm2421, %vm2422
        %v2424 = vsel %vm2423, %v2416, %v2420
        %v2425 = vand.u32 2147483647, %v2334
        %vm2426 = vcmp.eq.f32.partialorder %v2425, 8.507059e+37
        %v2427 = vand.u32 %v2334, 2147483648
        %v2428 = vor.u32 1.1754944e-38, %v2427
        %v2429 = vsel %vm2426, %v2428, %v2424
        %v2430 = vmul.f32 1.0, %v2429
        %v2431 = vrcp.pop %v2337
        %v2432 = vmul.f32 %v2337, %v2431
        %v2433 = vsub.f32 1.0, %v2432
        %v2434 = vmul.f32 %v2431, %v2433
        %v2435 = vadd.f32 %v2431, %v2434
        %vm2436 = vweird.f32 %v2337
        %vm2437 = vweird.f32 %v2431
        %vm2438 = vmor %vm2436, %vm2437
        %v2439 = vsel %vm2438, %v2431, %v2435
        %v2440 = vand.u32 2147483647, %v2337
        %vm2441 = vcmp.eq.f32.partialorder %v2440, 8.507059e+37
        %v2442 = vand.u32 %v2337, 2147483648
        %v2443 = vor.u32 1.1754944e-38, %v2442
        %v2444 = vsel %vm2441, %v2443, %v2439
        %v2445 = vmul.f32 1.0, %v2444
        %v2446 = vrcp.pop %v2340
        %v2447 = vmul.f32 %v2340, %v2446
        %v2448 = vsub.f32 1.0, %v2447
        %v2449 = vmul.f32 %v2446, %v2448
        %v2450 = vadd.f32 %v2446, %v2449
        %vm2451 = vweird.f32 %v2340
        %vm2452 = vweird.f32 %v2446
        %vm2453 = vmor %vm2451, %vm2452
        %v2454 = vsel %vm2453, %v2446, %v2450
        %v2455 = vand.u32 2147483647, %v2340
        %vm2456 = vcmp.eq.f32.partialorder %v2455, 8.507059e+37
        %v2457 = vand.u32 %v2340, 2147483648
        %v2458 = vor.u32 1.1754944e-38, %v2457
        %v2459 = vsel %vm2456, %v2458, %v2454
        %v2460 = vmul.f32 1.0, %v2459
        %v2461 = vmul.f32 %v2302, %v2355
        %v2462 = vmul.f32 %v2304, %v2370
        %v2463 = vmul.f32 %v2306, %v2385
        %v2464 = vmul.f32 %v2308, %v2400
        %v2465 = vmul.f32 %v2310, %v2415
        %v2466 = vmul.f32 %v2312, %v2430
        %v2467 = vmul.f32 %v2314, %v2445
        %v2468 = vmul.f32 %v2316, %v2460
        %2469 = vrot.lane.b32.xlu0 %v370, 104
        %v2470 = vpop.permute.xlu0 %2469
        %2471 = vrot.lane.b32.xlu0 %v371, 104
        %v2472 = vpop.permute.xlu0 %2471
        %v2476 = vsel %vm682, %v2461, 0
        %v2479 = vsel %vm682, %v2462, 0
        %2481 = vmatpush.msra.mxu0 0.0
        %2482 = vmatpush.msra.mxu0 0.0
        %2483 = vmatpush.msra.mxu0 0.0
        %2484 = vmatpush.msra.mxu0 0.0
        %2485 = vmatpush.msra.mxu0 0.0
        %2486 = vmatpush.msra.mxu0 0.0
        %2487 = vmatpush.msra.mxu0 0.0
        %2488 = vmatpush.msra.mxu0 0.0
        %2489 = vmatpush.msra.mxu0 0.0
        %2490 = vmatpush.msra.mxu0 0.0
        %2491 = vmatpush.msra.mxu0 0.0
        %2492 = vmatpush.msra.mxu0 0.0
        %2493 = vmatpush.msra.mxu0 0.0
        %2494 = vmatpush.msra.mxu0 0.0
        %2495 = vmatpush.msra.mxu0 %v2472
        %2496 = vmatpush.msra.mxu0 %v2470
        %2497 = vmatmul.f32.gmra.mxu0 %v2476
        %v2498 = vpop.f32.mrf.mxu0
        %v2499 = vadd.f32 0.0, %v2498
        %2500 = vmatmul.f32.gmra.mxu0 %v2479
        %v2501 = vpop.f32.mrf.mxu0
        %v2502 = vadd.f32 0.0, %v2501
        %2503 = vdwg.mxu0
        %2504 = vrot.lane.b32.xlu0 %v372, 104
        %v2505 = vpop.permute.xlu0 %2504
        %2506 = vrot.lane.b32.xlu0 %v373, 104
        %v2507 = vpop.permute.xlu0 %2506
        %v2511 = vsel %vm682, %v2463, 0
        %v2514 = vsel %vm682, %v2464, 0
        %2516 = vmatpush.msra.mxu0 0.0
        %2517 = vmatpush.msra.mxu0 0.0
        %2518 = vmatpush.msra.mxu0 0.0
        %2519 = vmatpush.msra.mxu0 0.0
        %2520 = vmatpush.msra.mxu0 0.0
        %2521 = vmatpush.msra.mxu0 0.0
        %2522 = vmatpush.msra.mxu0 0.0
        %2523 = vmatpush.msra.mxu0 0.0
        %2524 = vmatpush.msra.mxu0 0.0
        %2525 = vmatpush.msra.mxu0 0.0
        %2526 = vmatpush.msra.mxu0 0.0
        %2527 = vmatpush.msra.mxu0 0.0
        %2528 = vmatpush.msra.mxu0 0.0
        %2529 = vmatpush.msra.mxu0 0.0
        %2530 = vmatpush.msra.mxu0 %v2507
        %2531 = vmatpush.msra.mxu0 %v2505
        %2532 = vmatmul.f32.gmra.mxu0 %v2511
        %v2533 = vpop.f32.mrf.mxu0
        %v2534 = vadd.f32 0.0, %v2533
        %2535 = vmatmul.f32.gmra.mxu0 %v2514
        %v2536 = vpop.f32.mrf.mxu0
        %v2537 = vadd.f32 0.0, %v2536
        %2538 = vdwg.mxu0
        %2539 = vrot.lane.b32.xlu0 %v374, 104
        %v2540 = vpop.permute.xlu0 %2539
        %2541 = vrot.lane.b32.xlu0 %v375, 104
        %v2542 = vpop.permute.xlu0 %2541
        %v2546 = vsel %vm682, %v2465, 0
        %v2549 = vsel %vm682, %v2466, 0
        %2551 = vmatpush.msra.mxu0 0.0
        %2552 = vmatpush.msra.mxu0 0.0
        %2553 = vmatpush.msra.mxu0 0.0
        %2554 = vmatpush.msra.mxu0 0.0
        %2555 = vmatpush.msra.mxu0 0.0
        %2556 = vmatpush.msra.mxu0 0.0
        %2557 = vmatpush.msra.mxu0 0.0
        %2558 = vmatpush.msra.mxu0 0.0
        %2559 = vmatpush.msra.mxu0 0.0
        %2560 = vmatpush.msra.mxu0 0.0
        %2561 = vmatpush.msra.mxu0 0.0
        %2562 = vmatpush.msra.mxu0 0.0
        %2563 = vmatpush.msra.mxu0 0.0
        %2564 = vmatpush.msra.mxu0 0.0
        %2565 = vmatpush.msra.mxu0 %v2542
        %2566 = vmatpush.msra.mxu0 %v2540
        %2567 = vmatmul.f32.gmra.mxu0 %v2546
        %v2568 = vpop.f32.mrf.mxu0
        %v2569 = vadd.f32 0.0, %v2568
        %2570 = vmatmul.f32.gmra.mxu0 %v2549
        %v2571 = vpop.f32.mrf.mxu0
        %v2572 = vadd.f32 0.0, %v2571
        %2573 = vdwg.mxu0
        %2574 = vrot.lane.b32.xlu0 %v376, 104
        %v2575 = vpop.permute.xlu0 %2574
        %2576 = vrot.lane.b32.xlu0 %v377, 104
        %v2577 = vpop.permute.xlu0 %2576
        %v2581 = vsel %vm682, %v2467, 0
        %v2584 = vsel %vm682, %v2468, 0
        %2586 = vmatpush.msra.mxu0 0.0
        %2587 = vmatpush.msra.mxu0 0.0
        %2588 = vmatpush.msra.mxu0 0.0
        %2589 = vmatpush.msra.mxu0 0.0
        %2590 = vmatpush.msra.mxu0 0.0
        %2591 = vmatpush.msra.mxu0 0.0
        %2592 = vmatpush.msra.mxu0 0.0
        %2593 = vmatpush.msra.mxu0 0.0
        %2594 = vmatpush.msra.mxu0 0.0
        %2595 = vmatpush.msra.mxu0 0.0
        %2596 = vmatpush.msra.mxu0 0.0
        %2597 = vmatpush.msra.mxu0 0.0
        %2598 = vmatpush.msra.mxu0 0.0
        %2599 = vmatpush.msra.mxu0 0.0
        %2600 = vmatpush.msra.mxu0 %v2577
        %2601 = vmatpush.msra.mxu0 %v2575
        %2602 = vmatmul.f32.gmra.mxu0 %v2581
        %v2603 = vpop.f32.mrf.mxu0
        %v2604 = vadd.f32 0.0, %v2603
        %2605 = vmatmul.f32.gmra.mxu0 %v2584
        %v2606 = vpop.f32.mrf.mxu0
        %v2607 = vadd.f32 0.0, %v2606
        %2608 = vdwg.mxu0
        %2617 = vrot.lane.b32.xlu0 %v2499, 24
        %v2618 = vpop.permute.xlu0 %2617
        %2619 = vrot.lane.b32.xlu0 %v2502, 24
        %v2620 = vpop.permute.xlu0 %2619
        %2621 = vrot.lane.b32.xlu0 %v2534, 24
        %v2622 = vpop.permute.xlu0 %2621
        %2623 = vrot.lane.b32.xlu0 %v2537, 24
        %v2624 = vpop.permute.xlu0 %2623
        %2625 = vrot.lane.b32.xlu0 %v2569, 24
        %v2626 = vpop.permute.xlu0 %2625
        %2627 = vrot.lane.b32.xlu0 %v2572, 24
        %v2628 = vpop.permute.xlu0 %2627
        %2629 = vrot.lane.b32.xlu0 %v2604, 24
        %v2630 = vpop.permute.xlu0 %2629
        %2631 = vrot.lane.b32.xlu0 %v2607, 24
        %v2632 = vpop.permute.xlu0 %2631
        %vm2641 = vcmask 261312
        %2642 = vst.msk [vmem:[#allocation2] sm:$0xff] %vm2641, %v2618
        %2643 = vst.msk [vmem:[#allocation2 + $0x8] sm:$0xff] %vm2641, %v2620
        %2644 = vst.msk [vmem:[#allocation2 + $0x10] sm:$0xff] %vm2641, %v2622
        %2645 = vst.msk [vmem:[#allocation2 + $0x18] sm:$0xff] %vm2641, %v2624
        %2646 = vst.msk [vmem:[#allocation2 + $0x20] sm:$0xff] %vm2641, %v2626
        %2647 = vst.msk [vmem:[#allocation2 + $0x28] sm:$0xff] %vm2641, %v2628
        %2648 = vst.msk [vmem:[#allocation2 + $0x30] sm:$0xff] %vm2641, %v2630
        %2649 = vst.msk [vmem:[#allocation2 + $0x38] sm:$0xff] %vm2641, %v2632
        %v2650 = vld [vmem:[#allocation2] sm:$0xff]
        %v2651 = vld [vmem:[#allocation2 + $0x8] sm:$0xff]
        %v2652 = vld [vmem:[#allocation2 + $0x10] sm:$0xff]
        %v2653 = vld [vmem:[#allocation2 + $0x18] sm:$0xff]
        %v2654 = vld [vmem:[#allocation2 + $0x20] sm:$0xff]
        %v2655 = vld [vmem:[#allocation2 + $0x28] sm:$0xff]
        %v2656 = vld [vmem:[#allocation2 + $0x30] sm:$0xff]
        %v2657 = vld [vmem:[#allocation2 + $0x38] sm:$0xff]
        %v2658 = vld [vmem:[%s7] sm:$0xff]
        %v2659 = vld [vmem:[%s7 + $0x8] sm:$0xff]
        %v2660 = vld [vmem:[%s7 + $0x10] sm:$0xff]
        %v2661 = vld [vmem:[%s7 + $0x18] sm:$0xff]
        %v2662 = vld [vmem:[%s8] sm:$0x1]
        %v2664 = vperm.slane %v2662, 0
        %v2667 = vsel %vm386, %v2650, 0
        %v2670 = vsel %vm386, %v2651, 0
        %v2673 = vsel %vm386, %v2652, 0
        %v2676 = vsel %vm386, %v2653, 0
        %v2679 = vsel %vm386, %v2654, 0
        %v2682 = vsel %vm386, %v2655, 0
        %v2685 = vsel %vm386, %v2656, 0
        %v2688 = vsel %vm386, %v2657, 0
        %2690 = vmatpush.msra.mxu0 0.0
        %2691 = vmatpush.msra.mxu0 0.0
        %2692 = vmatpush.msra.mxu0 0.0
        %2693 = vmatpush.msra.mxu0 0.0
        %2694 = vmatpush.msra.mxu0 0.0
        %2695 = vmatpush.msra.mxu0 0.0
        %2696 = vmatpush.msra.mxu0 0.0
        %2697 = vmatpush.msra.mxu0 0.0
        %2698 = vmatpush.msra.mxu0 0.0
        %2699 = vmatpush.msra.mxu0 0.0
        %2700 = vmatpush.msra.mxu0 0.0
        %2701 = vmatpush.msra.mxu0 0.0
        %2702 = vmatpush.msra.mxu0 %v2661
        %2703 = vmatpush.msra.mxu0 %v2660
        %2704 = vmatpush.msra.mxu0 %v2659
        %2705 = vmatpush.msra.mxu0 %v2658
        %2706 = vmatmul.f32.gmra.mxu0 %v2667
        %v2707 = vpop.f32.mrf.mxu0
        %v2708 = vadd.f32 %v2664, %v2707
        %2709 = vmatmul.f32.gmra.mxu0 %v2670
        %v2710 = vpop.f32.mrf.mxu0
        %v2711 = vadd.f32 %v2664, %v2710
        %2712 = vmatmul.f32.gmra.mxu0 %v2673
        %v2713 = vpop.f32.mrf.mxu0
        %v2714 = vadd.f32 %v2664, %v2713
        %2715 = vmatmul.f32.gmra.mxu0 %v2676
        %v2716 = vpop.f32.mrf.mxu0
        %v2717 = vadd.f32 %v2664, %v2716
        %2718 = vmatmul.f32.gmra.mxu0 %v2679
        %v2719 = vpop.f32.mrf.mxu0
        %v2720 = vadd.f32 %v2664, %v2719
        %2721 = vmatmul.f32.gmra.mxu0 %v2682
        %v2722 = vpop.f32.mrf.mxu0
        %v2723 = vadd.f32 %v2664, %v2722
        %2724 = vmatmul.f32.gmra.mxu0 %v2685
        %v2725 = vpop.f32.mrf.mxu0
        %v2726 = vadd.f32 %v2664, %v2725
        %2727 = vmatmul.f32.gmra.mxu0 %v2688
        %v2728 = vpop.f32.mrf.mxu0
        %v2729 = vadd.f32 %v2664, %v2728
        %2730 = vdwg.mxu0
        %2731 = vst.msk [vmem:[%s346] sm:$0xff] %vm386, %v2708
        %2732 = vst.msk [vmem:[%s346 + $0x8] sm:$0xff] %vm386, %v2711
        %2733 = vst.msk [vmem:[%s346 + $0x10] sm:$0xff] %vm386, %v2714
        %2734 = vst.msk [vmem:[%s346 + $0x18] sm:$0xff] %vm386, %v2717
        %2735 = vst.msk [vmem:[%s346 + $0x20] sm:$0xff] %vm386, %v2720
        %2736 = vst.msk [vmem:[%s346 + $0x28] sm:$0xff] %vm386, %v2723
        %2737 = vst.msk [vmem:[%s346 + $0x30] sm:$0xff] %vm386, %v2726
        %2738 = vst.msk [vmem:[%s346 + $0x38] sm:$0xff] %vm386, %v2729
        %s2739 = sand.u32 %s230, 1
        %s2740 = scalar_lea.sflag [#allocation4], %s2739
        %s2741 = sand.u32 %s230, 1
        %s2742 = smul.addr %s2741, 64
        %s2743 = scalar_lea.vmem [#allocation3], %s2742
        // Predicated region
        $region57: #{window_attention_forward.1} parent=55 // pred_check
          %p2744 = pneg %p240
        $region58: #{window_attention_forward.1} parent=55 // pred_check_branch
          %2746 = sbr.rel (%p2744) target = $region60
        $region59: #{window_attention_forward.1} parent=55 // pred_region
          %s2747 = smul.u32 4, %s23
          %2749 = vsyncadd %s2740, 0
          %s2750 = smul.addr %s2747, 2
          %s2751 = smul.addr %s2750, 8
          %s2752 = scalar_lea.hbm %s9, %s2751
          %s2753 = sshll.u32 %s2743, 4
          %s2754 = int_to_ptr.vmem [resolvable:$true] %s2753
          %s2755 = sshll.u32 %s2752, 4
          %s2756 = int_to_ptr.hbm [resolvable:$true] %s2755
          %2761 = dma.vmem_to_hbm [thread:$0]  %s2754, 1024, %s2756, %s2740, 128, 128, 8
        $region60: #{window_attention_forward.1} parent=55 // pred_fallthru
          _
      $region56: #{window_attention_forward.1} parent=5 // pred_fallthru
        _
      %p2762 = scmp.le.s32.totalorder 2, %s18
      // Predicated region
      $region61: #{window_attention_forward.1} parent=5 // pred_check
        %p2763 = pneg %p2762
      $region62: #{window_attention_forward.1} parent=5 // pred_check_branch
        %2765 = sbr.rel (%p2763) target = $region64
      $region63: #{window_attention_forward.1} parent=5 // pred_region
        %s2766 = ssub.s32 %s18, 2
        // Predicated region
        $region65: #{window_attention_forward.1} parent=63 // pred_check
          %p2767 = pneg %p246
        $region66: #{window_attention_forward.1} parent=63 // pred_check_branch
          %2769 = sbr.rel (%p2767) target = $region68
        $region67: #{window_attention_forward.1} parent=63 // pred_region
          %s2770 = sand.u32 %s231, 1
          %s2771 = scalar_lea.sflag [#allocation4], %s2770
          %s2772 = sand.u32 %s231, 1
          %s2773 = smul.addr %s2772, 64
          %s2774 = scalar_lea.vmem [#allocation3], %s2773
          %2776 = dma.done %s2771, 1024
        $region68: #{window_attention_forward.1} parent=63 // pred_fallthru
          _
      $region64: #{window_attention_forward.1} parent=5 // pred_fallthru
        _
    $region6: #{window_attention_forward.1} parent=1 // loop_footer
      %s22 = sadd.s32 1, %s18
    $region7: #{window_attention_forward.1} parent=1 // loop_footer_branch
      %17 = sbr.rel target = $region3
    $region8: #{window_attention_forward.1} parent=1 // loop_exit
      _
    %2777 = vsyncpa [#allocation4], 1
    %s2778 = scalar_lea.sflag [#allocation4], 1
    %2779 = vsyncpa %s2778, 1

</llo_original>
